<compile_context>
chip_gen: v7x
topology: tpu7x:2x2x1
jax: 0.10.0
libtpu: 0.0.40
codegen_flags: <defaults>
</compile_context>

<pallas_src>
import numpy as np
import jax
import jax.numpy as jnp
from jax import lax
from jax.experimental import pallas as pl
from jax.experimental.pallas import tpu as pltpu


# ----------------------------- Pallas kernel ------------------------------ #
def ab_fused_kernel(scal_ref, x_ref, w1t_ref, b1_ref, w2t_ref, b2_ref, out_ref):
    """Runs ALL AB steps on one lane-dense (C, TN) activation tile.

    scal_ref (SMEM, (steps, 8) f32), per step s:
      [s,0]=t  [s,1]=alpha_t  [s,2]=1/sigma_t  [s,3]=alpha_s
      [s,4]=c_cur  [s,5]=c_prev1  [s,6]=c_prev2  [s,7]=alpha_s/alpha_t
    """
    n_steps = scal_ref.shape[0]
    hd = w1t_ref.shape[0]
    c, tn = x_ref.shape

    # Loop-invariant loads / broadcasts hoisted out of the step loop
    # (JAX does not CSE broadcast_in_dim inside loops).
    w1t = w1t_ref[...]                                   # (HD, C)
    w2t = w2t_ref[...]                                   # (C, HD)
    b1 = jnp.broadcast_to(b1_ref[...], (hd, tn))         # (HD, TN)
    b2 = jnp.broadcast_to(b2_ref[...], (c, tn))          # (C, TN)

    x0 = x_ref[...]                                      # (C, TN)  x_{t_T}
    z0 = jnp.zeros_like(x0)

    def step(s, carry):
        x, z1, z2 = carry                                # x_t, z_{i-1}, z_{i-2}
        t = scal_ref[s, 0]
        alpha_t = scal_ref[s, 1]
        inv_sigma_t = scal_ref[s, 2]
        alpha_s = scal_ref[s, 3]
        c0 = scal_ref[s, 4]
        c1 = scal_ref[s, 5]
        c2 = scal_ref[s, 6]
        alpha_ratio = scal_ref[s, 7]

        # Denoiser mean: per-position MLP over channels.  Contraction depths
        # are only C=4 / HD=32 (low MXU utilization), but the MXU push/pop sits
        # on the vex slot and overlaps the VPU AB update, so jnp.dot is fine
        # at these sizes.
        h = jnp.tanh(jnp.dot(w1t, x, preferred_element_type=jnp.float32)
                     + b1 + t)                           # (HD, TN)
        q_mean = (jnp.dot(w2t, h, preferred_element_type=jnp.float32)
                  + b2)                                  # (C, TN)

        # z_t = (x_t - alpha_t * E[X|x_t]) / sigma_t   (reciprocal precomputed)
        z_t = (x - alpha_t * q_mean) * inv_sigma_t
        # AB linear-multistep integral and update:
        #   x_s = (alpha_s/alpha_t) x_t + alpha_s * sum_i c_i z_{t_i}
        integral = c0 * z_t + c1 * z1 + c2 * z2
        x_s = alpha_ratio * x + alpha_s * integral
        return x_s, z_t, z1

    x_final, _, _ = lax.fori_loop(0, n_steps, step, (x0, z0, z0), unroll=True)
    out_ref[...] = x_final


def _choose_lane_tile(n_pad, max_tile=4096):
    """Largest multiple-of-128 tile that divides n_pad and is <= max_tile,
    preferring >= 2 grid blocks (v7x has two TensorCores)."""
    cands = [t for t in range(128, min(n_pad, max_tile) + 1, 128)
             if n_pad % t == 0]
    multi = [t for t in cands if n_pad // t >= 2]
    return max(multi) if multi else max(cands)


@jax.jit
def _ab_forward(x_nchw, scal, w1t, b1c, w2t, b2c):
    B, C, H, W = x_nchw.shape
    N = B * H * W
    HD = w1t.shape[0]

    # Channels-on-sublanes / positions-on-lanes layout, zero-padded on lanes.
    x2d = jnp.transpose(x_nchw.astype(jnp.float32), (1, 0, 2, 3)).reshape(C, N)
    n_pad = ((N + 127) // 128) * 128
    if n_pad != N:
        x2d = jnp.pad(x2d, ((0, 0), (0, n_pad - N)))
    tile_n = _choose_lane_tile(n_pad)
    grid = (n_pad // tile_n,)

    act_spec = pl.BlockSpec((C, tile_n), lambda i: (0, i))
    out = pl.pallas_call(
        ab_fused_kernel,
        out_shape=jax.ShapeDtypeStruct((C, n_pad), jnp.float32),
        grid=grid,
        in_specs=[
            pl.BlockSpec(memory_space=pltpu.SMEM),      # per-step scalar table
            act_spec,                                   # x_{t_T}   (C, Npad)
            pl.BlockSpec((HD, C), lambda i: (0, 0)),    # W1^T
            pl.BlockSpec((HD, 1), lambda i: (0, 0)),    # b1
            pl.BlockSpec((C, HD), lambda i: (0, 0)),    # W2^T
            pl.BlockSpec((C, 1), lambda i: (0, 0)),     # b2
        ],
        out_specs=act_spec,
        input_output_aliases={1: 0},                    # write x_{t_0} over x_{t_T}
        compiler_params=pltpu.CompilerParams(
            dimension_semantics=("parallel",)),
    )(scal, x2d, w1t, b1c, w2t, b2c)

    out = out[:, :N].reshape(C, B, H, W)
    return jnp.transpose(out, (1, 0, 2, 3))


# --------------------------- Host-side sampler ----------------------------- #
def schedule_np(t):
    t = np.asarray(t, dtype=np.float64)
    alpha = 1.0 / np.sqrt(1.0 + t ** 2)
    sigma = t / np.sqrt(1.0 + t ** 2)
    return alpha, sigma


def adams_bashforth_np(t, n=3):
    """NumPy float64 mirror of ABSampler.adams_bashforth (tiny n<=3 solve)."""
    t = np.asarray(t, dtype=np.float64)
    m = len(t) - 1
    n = min(n, m)
    k = np.arange(n, dtype=np.float64)
    V = t[m - n:m] ** k[:, None]                       # (n, n)
    b = t[m] ** (k + 1) / (k + 1) - t[m - 1] ** (k + 1) / (k + 1)
    return np.linalg.solve(V, b)                       # oldest -> newest


class ABSamplerPallas:
    """Adams-Bashforth multi-step sampler with a synthetic MLP denoiser."""

    def __init__(self, channels, hidden, start=1.0, stop=0.0, steps=8, order=3,
                 seed=0):
        self.start, self.stop, self.steps, self.order = start, stop, steps, order
        k1, k2, k3, k4 = jax.random.split(jax.random.PRNGKey(seed), 4)
        self.w1 = (jax.random.normal(k1, (channels, hidden), jnp.float32)
                   / np.sqrt(channels))
        self.b1 = 0.01 * jax.random.normal(k2, (1, hidden), jnp.float32)
        self.w2 = (jax.random.normal(k3, (hidden, channels), jnp.float32)
                   / np.sqrt(hidden))
        self.b2 = 0.01 * jax.random.normal(k4, (1, channels), jnp.float32)
        # Transposed copies for the lane-dense (C, N) kernel layout.
        self.w1t = jnp.asarray(self.w1.T)              # (HD, C)
        self.b1c = jnp.asarray(self.b1.T)              # (HD, 1)
        self.w2t = jnp.asarray(self.w2.T)              # (C, HD)
        self.b2c = jnp.asarray(self.b2.T)              # (C, 1)
        self._scal = jnp.asarray(self._scalar_table()) # (steps, 8) f32

    @property
    def timesteps(self):
        return np.linspace(self.start, self.stop, self.steps + 1)

    def _scalar_table(self):
        """(steps, 8): t, alpha_t, 1/sigma_t, alpha_s, c_cur, c_prev1, c_prev2,
        alpha_s/alpha_t."""
        ts = self.timesteps
        alpha, sigma = schedule_np(ts)
        rho = sigma / alpha                            # == ts for this schedule
        rows = []
        for i in range(self.steps):
            coeffs = adams_bashforth_np(rho[:i + 2], n=self.order)  # oldest first
            n = len(coeffs)
            c_cur = coeffs[n - 1]
            c_prev1 = coeffs[n - 2] if n >= 2 else 0.0
            c_prev2 = coeffs[n - 3] if n >= 3 else 0.0
            rows.append([ts[i], alpha[i], 1.0 / sigma[i], alpha[i + 1],
                         c_cur, c_prev1, c_prev2, alpha[i + 1] / alpha[i]])
        return np.asarray(rows, dtype=np.float32)

    def forward(self, x_nchw):
        return _ab_forward(x_nchw, self._scal,
                           self.w1t, self.b1c, self.w2t, self.b2c)

    # Pure-JAX reference (mirrors the PyTorch module) for verification.
    def forward_ref(self, x_nchw):
        B, C, H, W = x_nchw.shape
        x = jnp.transpose(x_nchw, (0, 2, 3, 1)).reshape(B * H * W, C)
        x = x.astype(jnp.float32)
        ts = self.timesteps
        alpha, sigma = schedule_np(ts)
        rho = sigma / alpha
        buffer = []
        for i in range(self.steps):
            t, a_t, s_t = float(ts[i]), float(alpha[i]), float(sigma[i])
            a_s = float(alpha[i + 1])
            h = jnp.tanh(x @ self.w1 + self.b1 + t)
            mean = h @ self.w2 + self.b2
            z_t = (x - a_t * mean) / s_t
            buffer.append(z_t)
            if len(buffer) > self.order:
                buffer.pop(0)
            coeffs = adams_bashforth_np(rho[:i + 2], n=self.order)
            integral = sum(float(c) * b for b, c in zip(buffer, coeffs))
            x = (a_s / a_t) * x + a_s * integral
        return jnp.transpose(x.reshape(B, H, W, C), (0, 3, 1, 2))


if __name__ == "__main__":
    B, C, H, W = 2, 4, 16, 16          # N = B*H*W = 512 -> 2 lane tiles of 256
    HIDDEN = 32

    key = jax.random.PRNGKey(0)
    x = jax.random.normal(key, (B, C, H, W), jnp.float32)   # noisy x_{t_T}

    sampler = ABSamplerPallas(channels=C, hidden=HIDDEN, steps=8, order=3, seed=0)

    out = jax.block_until_ready(sampler.forward(x))
    ref = jax.block_until_ready(sampler.forward_ref(x))
    assert out.shape == (B, C, H, W)
    np.testing.assert_allclose(np.asarray(out), np.asarray(ref),
                               rtol=2e-3, atol=2e-3)

    # Extra check: N not a multiple of 128 exercises the lane-padding path.
    x_odd = jax.random.normal(jax.random.PRNGKey(1), (1, C, 5, 5), jnp.float32)
    out_odd = jax.block_until_ready(sampler.forward(x_odd))
    ref_odd = jax.block_until_ready(sampler.forward_ref(x_odd))
    np.testing.assert_allclose(np.asarray(out_odd), np.asarray(ref_odd),
                               rtol=2e-3, atol=2e-3)

    print("KERNEL_OK")
</pallas_src>

<mosaic_0001>
module attributes {stable_mosaic.version = 11 : i64} {
  func.func @ab_fused_kernel(%arg0: i32, %arg1: memref<8x8xf32, #tpu.memory_space<smem>>, %arg2: memref<4x256xf32, #tpu.memory_space<vmem>>, %arg3: memref<32x4xf32, #tpu.memory_space<vmem>>, %arg4: memref<32x1xf32, #tpu.memory_space<vmem>>, %arg5: memref<4x32xf32, #tpu.memory_space<vmem>>, %arg6: memref<4x1xf32, #tpu.memory_space<vmem>>, %arg7: memref<4x256xf32, #tpu.memory_space<vmem>>) attributes {dimension_semantics = [#tpu.dimension_semantics<parallel>], iteration_bounds = array<i64: 2>, scalar_prefetch = 0 : i64, scratch_operands = 0 : i64, tpu.core_type = #tpu.core_type<tc>, window_params = [{transform_indices = @transform_0, window_bounds = array<i64: 8, 8>}, {transform_indices = @transform_1, window_bounds = array<i64: 4, 256>}, {pipeline_mode = #tpu.pipeline_mode<synchronous>, transform_indices = @transform_2, window_bounds = array<i64: 32, 4>}, {pipeline_mode = #tpu.pipeline_mode<synchronous>, transform_indices = @transform_3, window_bounds = array<i64: 32, 1>}, {pipeline_mode = #tpu.pipeline_mode<synchronous>, transform_indices = @transform_4, window_bounds = array<i64: 4, 32>}, {pipeline_mode = #tpu.pipeline_mode<synchronous>, transform_indices = @transform_5, window_bounds = array<i64: 4, 1>}, {transform_indices = @transform_6, window_bounds = array<i64: 4, 256>}]} {
    %c0 = arith.constant 0 : index
    %c0_0 = arith.constant 0 : index
    %0 = vector.load %arg3[%c0, %c0_0] : memref<32x4xf32, #tpu.memory_space<vmem>>, vector<32x4xf32>
    %c0_1 = arith.constant 0 : index
    %c0_2 = arith.constant 0 : index
    %1 = vector.load %arg5[%c0_1, %c0_2] : memref<4x32xf32, #tpu.memory_space<vmem>>, vector<4x32xf32>
    %c0_3 = arith.constant 0 : index
    %c0_4 = arith.constant 0 : index
    %2 = vector.load %arg4[%c0_3, %c0_4] : memref<32x1xf32, #tpu.memory_space<vmem>>, vector<32x1xf32>
    %3 = vector.shape_cast %2 : vector<32x1xf32> to vector<32x1xf32>
    %4 = vector.broadcast %3 : vector<32x1xf32> to vector<32x256xf32>
    %c0_5 = arith.constant 0 : index
    %c0_6 = arith.constant 0 : index
    %5 = vector.load %arg6[%c0_5, %c0_6] : memref<4x1xf32, #tpu.memory_space<vmem>>, vector<4x1xf32>
    %6 = vector.shape_cast %5 : vector<4x1xf32> to vector<4x1xf32>
    %7 = vector.broadcast %6 : vector<4x1xf32> to vector<4x256xf32>
    %c0_7 = arith.constant 0 : index
    %c0_8 = arith.constant 0 : index
    %8 = vector.load %arg2[%c0_7, %c0_8] : memref<4x256xf32, #tpu.memory_space<vmem>>, vector<4x256xf32>
    %cst = arith.constant 0.000000e+00 : f32
    %9 = vector.broadcast %cst : f32 to vector<4x256xf32>
    %c0_i32 = arith.constant 0 : i32
    %10 = arith.index_cast %c0_i32 : i32 to index
    %c0_9 = arith.constant 0 : index
    %11 = memref.load %arg1[%10, %c0_9] : memref<8x8xf32, #tpu.memory_space<smem>>
    %12 = arith.index_cast %c0_i32 : i32 to index
    %c1 = arith.constant 1 : index
    %13 = memref.load %arg1[%12, %c1] : memref<8x8xf32, #tpu.memory_space<smem>>
    %14 = arith.index_cast %c0_i32 : i32 to index
    %c2 = arith.constant 2 : index
    %15 = memref.load %arg1[%14, %c2] : memref<8x8xf32, #tpu.memory_space<smem>>
    %16 = arith.index_cast %c0_i32 : i32 to index
    %c3 = arith.constant 3 : index
    %17 = memref.load %arg1[%16, %c3] : memref<8x8xf32, #tpu.memory_space<smem>>
    %18 = arith.index_cast %c0_i32 : i32 to index
    %c4 = arith.constant 4 : index
    %19 = memref.load %arg1[%18, %c4] : memref<8x8xf32, #tpu.memory_space<smem>>
    %20 = arith.index_cast %c0_i32 : i32 to index
    %c5 = arith.constant 5 : index
    %21 = memref.load %arg1[%20, %c5] : memref<8x8xf32, #tpu.memory_space<smem>>
    %22 = arith.index_cast %c0_i32 : i32 to index
    %c6 = arith.constant 6 : index
    %23 = memref.load %arg1[%22, %c6] : memref<8x8xf32, #tpu.memory_space<smem>>
    %24 = arith.index_cast %c0_i32 : i32 to index
    %c7 = arith.constant 7 : index
    %25 = memref.load %arg1[%24, %c7] : memref<8x8xf32, #tpu.memory_space<smem>>
    %cst_10 = arith.constant dense<0.000000e+00> : vector<32x256xf32>
    %26 = tpu.matmul %0, %8, %cst_10 {dimension_numbers = #tpu.dot_dimension_numbers<[1], [0], [0], [1], [0, 0, 1, 1], [], []>} : vector<32x4xf32>, vector<4x256xf32>, vector<32x256xf32> -> vector<32x256xf32>
    %27 = arith.addf %26, %4 : vector<32x256xf32>
    %28 = vector.broadcast %11 : f32 to vector<32x256xf32>
    %29 = arith.addf %27, %28 : vector<32x256xf32>
    %30 = math.tanh %29 : vector<32x256xf32>
    %cst_11 = arith.constant dense<0.000000e+00> : vector<4x256xf32>
    %31 = tpu.matmul %1, %30, %cst_11 {dimension_numbers = #tpu.dot_dimension_numbers<[1], [0], [0], [1], [0, 0, 1, 1], [], []>} : vector<4x32xf32>, vector<32x256xf32>, vector<4x256xf32> -> vector<4x256xf32>
    %32 = arith.addf %31, %7 : vector<4x256xf32>
    %33 = vector.broadcast %13 : f32 to vector<4x256xf32>
    %34 = arith.mulf %33, %32 : vector<4x256xf32>
    %35 = arith.subf %8, %34 : vector<4x256xf32>
    %36 = vector.broadcast %15 : f32 to vector<4x256xf32>
    %37 = arith.mulf %35, %36 : vector<4x256xf32>
    %38 = vector.broadcast %19 : f32 to vector<4x256xf32>
    %39 = arith.mulf %38, %37 : vector<4x256xf32>
    %40 = vector.broadcast %21 : f32 to vector<4x256xf32>
    %41 = arith.mulf %40, %9 : vector<4x256xf32>
    %42 = arith.addf %39, %41 : vector<4x256xf32>
    %43 = vector.broadcast %23 : f32 to vector<4x256xf32>
    %44 = arith.mulf %43, %9 : vector<4x256xf32>
    %45 = arith.addf %42, %44 : vector<4x256xf32>
    %46 = vector.broadcast %25 : f32 to vector<4x256xf32>
    %47 = arith.mulf %46, %8 : vector<4x256xf32>
    %48 = vector.broadcast %17 : f32 to vector<4x256xf32>
    %49 = arith.mulf %48, %45 : vector<4x256xf32>
    %50 = arith.addf %47, %49 : vector<4x256xf32>
    %c1_i32 = arith.constant 1 : i32
    %51 = arith.index_cast %c1_i32 : i32 to index
    %c0_12 = arith.constant 0 : index
    %52 = memref.load %arg1[%51, %c0_12] : memref<8x8xf32, #tpu.memory_space<smem>>
    %53 = arith.index_cast %c1_i32 : i32 to index
    %c1_13 = arith.constant 1 : index
    %54 = memref.load %arg1[%53, %c1_13] : memref<8x8xf32, #tpu.memory_space<smem>>
    %55 = arith.index_cast %c1_i32 : i32 to index
    %c2_14 = arith.constant 2 : index
    %56 = memref.load %arg1[%55, %c2_14] : memref<8x8xf32, #tpu.memory_space<smem>>
    %57 = arith.index_cast %c1_i32 : i32 to index
    %c3_15 = arith.constant 3 : index
    %58 = memref.load %arg1[%57, %c3_15] : memref<8x8xf32, #tpu.memory_space<smem>>
    %59 = arith.index_cast %c1_i32 : i32 to index
    %c4_16 = arith.constant 4 : index
    %60 = memref.load %arg1[%59, %c4_16] : memref<8x8xf32, #tpu.memory_space<smem>>
    %61 = arith.index_cast %c1_i32 : i32 to index
    %c5_17 = arith.constant 5 : index
    %62 = memref.load %arg1[%61, %c5_17] : memref<8x8xf32, #tpu.memory_space<smem>>
    %63 = arith.index_cast %c1_i32 : i32 to index
    %c6_18 = arith.constant 6 : index
    %64 = memref.load %arg1[%63, %c6_18] : memref<8x8xf32, #tpu.memory_space<smem>>
    %65 = arith.index_cast %c1_i32 : i32 to index
    %c7_19 = arith.constant 7 : index
    %66 = memref.load %arg1[%65, %c7_19] : memref<8x8xf32, #tpu.memory_space<smem>>
    %cst_20 = arith.constant dense<0.000000e+00> : vector<32x256xf32>
    %67 = tpu.matmul %0, %50, %cst_20 {dimension_numbers = #tpu.dot_dimension_numbers<[1], [0], [0], [1], [0, 0, 1, 1], [], []>} : vector<32x4xf32>, vector<4x256xf32>, vector<32x256xf32> -> vector<32x256xf32>
    %68 = arith.addf %67, %4 : vector<32x256xf32>
    %69 = vector.broadcast %52 : f32 to vector<32x256xf32>
    %70 = arith.addf %68, %69 : vector<32x256xf32>
    %71 = math.tanh %70 : vector<32x256xf32>
    %cst_21 = arith.constant dense<0.000000e+00> : vector<4x256xf32>
    %72 = tpu.matmul %1, %71, %cst_21 {dimension_numbers = #tpu.dot_dimension_numbers<[1], [0], [0], [1], [0, 0, 1, 1], [], []>} : vector<4x32xf32>, vector<32x256xf32>, vector<4x256xf32> -> vector<4x256xf32>
    %73 = arith.addf %72, %7 : vector<4x256xf32>
    %74 = vector.broadcast %54 : f32 to vector<4x256xf32>
    %75 = arith.mulf %74, %73 : vector<4x256xf32>
    %76 = arith.subf %50, %75 : vector<4x256xf32>
    %77 = vector.broadcast %56 : f32 to vector<4x256xf32>
    %78 = arith.mulf %76, %77 : vector<4x256xf32>
    %79 = vector.broadcast %60 : f32 to vector<4x256xf32>
    %80 = arith.mulf %79, %78 : vector<4x256xf32>
    %81 = vector.broadcast %62 : f32 to vector<4x256xf32>
    %82 = arith.mulf %81, %37 : vector<4x256xf32>
    %83 = arith.addf %80, %82 : vector<4x256xf32>
    %84 = vector.broadcast %64 : f32 to vector<4x256xf32>
    %85 = arith.mulf %84, %9 : vector<4x256xf32>
    %86 = arith.addf %83, %85 : vector<4x256xf32>
    %87 = vector.broadcast %66 : f32 to vector<4x256xf32>
    %88 = arith.mulf %87, %50 : vector<4x256xf32>
    %89 = vector.broadcast %58 : f32 to vector<4x256xf32>
    %90 = arith.mulf %89, %86 : vector<4x256xf32>
    %91 = arith.addf %88, %90 : vector<4x256xf32>
    %c2_i32 = arith.constant 2 : i32
    %92 = arith.index_cast %c2_i32 : i32 to index
    %c0_22 = arith.constant 0 : index
    %93 = memref.load %arg1[%92, %c0_22] : memref<8x8xf32, #tpu.memory_space<smem>>
    %94 = arith.index_cast %c2_i32 : i32 to index
    %c1_23 = arith.constant 1 : index
    %95 = memref.load %arg1[%94, %c1_23] : memref<8x8xf32, #tpu.memory_space<smem>>
    %96 = arith.index_cast %c2_i32 : i32 to index
    %c2_24 = arith.constant 2 : index
    %97 = memref.load %arg1[%96, %c2_24] : memref<8x8xf32, #tpu.memory_space<smem>>
    %98 = arith.index_cast %c2_i32 : i32 to index
    %c3_25 = arith.constant 3 : index
    %99 = memref.load %arg1[%98, %c3_25] : memref<8x8xf32, #tpu.memory_space<smem>>
    %100 = arith.index_cast %c2_i32 : i32 to index
    %c4_26 = arith.constant 4 : index
    %101 = memref.load %arg1[%100, %c4_26] : memref<8x8xf32, #tpu.memory_space<smem>>
    %102 = arith.index_cast %c2_i32 : i32 to index
    %c5_27 = arith.constant 5 : index
    %103 = memref.load %arg1[%102, %c5_27] : memref<8x8xf32, #tpu.memory_space<smem>>
    %104 = arith.index_cast %c2_i32 : i32 to index
    %c6_28 = arith.constant 6 : index
    %105 = memref.load %arg1[%104, %c6_28] : memref<8x8xf32, #tpu.memory_space<smem>>
    %106 = arith.index_cast %c2_i32 : i32 to index
    %c7_29 = arith.constant 7 : index
    %107 = memref.load %arg1[%106, %c7_29] : memref<8x8xf32, #tpu.memory_space<smem>>
    %cst_30 = arith.constant dense<0.000000e+00> : vector<32x256xf32>
    %108 = tpu.matmul %0, %91, %cst_30 {dimension_numbers = #tpu.dot_dimension_numbers<[1], [0], [0], [1], [0, 0, 1, 1], [], []>} : vector<32x4xf32>, vector<4x256xf32>, vector<32x256xf32> -> vector<32x256xf32>
    %109 = arith.addf %108, %4 : vector<32x256xf32>
    %110 = vector.broadcast %93 : f32 to vector<32x256xf32>
    %111 = arith.addf %109, %110 : vector<32x256xf32>
    %112 = math.tanh %111 : vector<32x256xf32>
    %cst_31 = arith.constant dense<0.000000e+00> : vector<4x256xf32>
    %113 = tpu.matmul %1, %112, %cst_31 {dimension_numbers = #tpu.dot_dimension_numbers<[1], [0], [0], [1], [0, 0, 1, 1], [], []>} : vector<4x32xf32>, vector<32x256xf32>, vector<4x256xf32> -> vector<4x256xf32>
    %114 = arith.addf %113, %7 : vector<4x256xf32>
    %115 = vector.broadcast %95 : f32 to vector<4x256xf32>
    %116 = arith.mulf %115, %114 : vector<4x256xf32>
    %117 = arith.subf %91, %116 : vector<4x256xf32>
    %118 = vector.broadcast %97 : f32 to vector<4x256xf32>
    %119 = arith.mulf %117, %118 : vector<4x256xf32>
    %120 = vector.broadcast %101 : f32 to vector<4x256xf32>
    %121 = arith.mulf %120, %119 : vector<4x256xf32>
    %122 = vector.broadcast %103 : f32 to vector<4x256xf32>
    %123 = arith.mulf %122, %78 : vector<4x256xf32>
    %124 = arith.addf %121, %123 : vector<4x256xf32>
    %125 = vector.broadcast %105 : f32 to vector<4x256xf32>
    %126 = arith.mulf %125, %37 : vector<4x256xf32>
    %127 = arith.addf %124, %126 : vector<4x256xf32>
    %128 = vector.broadcast %107 : f32 to vector<4x256xf32>
    %129 = arith.mulf %128, %91 : vector<4x256xf32>
    %130 = vector.broadcast %99 : f32 to vector<4x256xf32>
    %131 = arith.mulf %130, %127 : vector<4x256xf32>
    %132 = arith.addf %129, %131 : vector<4x256xf32>
    %c3_i32 = arith.constant 3 : i32
    %133 = arith.index_cast %c3_i32 : i32 to index
    %c0_32 = arith.constant 0 : index
    %134 = memref.load %arg1[%133, %c0_32] : memref<8x8xf32, #tpu.memory_space<smem>>
    %135 = arith.index_cast %c3_i32 : i32 to index
    %c1_33 = arith.constant 1 : index
    %136 = memref.load %arg1[%135, %c1_33] : memref<8x8xf32, #tpu.memory_space<smem>>
    %137 = arith.index_cast %c3_i32 : i32 to index
    %c2_34 = arith.constant 2 : index
    %138 = memref.load %arg1[%137, %c2_34] : memref<8x8xf32, #tpu.memory_space<smem>>
    %139 = arith.index_cast %c3_i32 : i32 to index
    %c3_35 = arith.constant 3 : index
    %140 = memref.load %arg1[%139, %c3_35] : memref<8x8xf32, #tpu.memory_space<smem>>
    %141 = arith.index_cast %c3_i32 : i32 to index
    %c4_36 = arith.constant 4 : index
    %142 = memref.load %arg1[%141, %c4_36] : memref<8x8xf32, #tpu.memory_space<smem>>
    %143 = arith.index_cast %c3_i32 : i32 to index
    %c5_37 = arith.constant 5 : index
    %144 = memref.load %arg1[%143, %c5_37] : memref<8x8xf32, #tpu.memory_space<smem>>
    %145 = arith.index_cast %c3_i32 : i32 to index
    %c6_38 = arith.constant 6 : index
    %146 = memref.load %arg1[%145, %c6_38] : memref<8x8xf32, #tpu.memory_space<smem>>
    %147 = arith.index_cast %c3_i32 : i32 to index
    %c7_39 = arith.constant 7 : index
    %148 = memref.load %arg1[%147, %c7_39] : memref<8x8xf32, #tpu.memory_space<smem>>
    %cst_40 = arith.constant dense<0.000000e+00> : vector<32x256xf32>
    %149 = tpu.matmul %0, %132, %cst_40 {dimension_numbers = #tpu.dot_dimension_numbers<[1], [0], [0], [1], [0, 0, 1, 1], [], []>} : vector<32x4xf32>, vector<4x256xf32>, vector<32x256xf32> -> vector<32x256xf32>
    %150 = arith.addf %149, %4 : vector<32x256xf32>
    %151 = vector.broadcast %134 : f32 to vector<32x256xf32>
    %152 = arith.addf %150, %151 : vector<32x256xf32>
    %153 = math.tanh %152 : vector<32x256xf32>
    %cst_41 = arith.constant dense<0.000000e+00> : vector<4x256xf32>
    %154 = tpu.matmul %1, %153, %cst_41 {dimension_numbers = #tpu.dot_dimension_numbers<[1], [0], [0], [1], [0, 0, 1, 1], [], []>} : vector<4x32xf32>, vector<32x256xf32>, vector<4x256xf32> -> vector<4x256xf32>
    %155 = arith.addf %154, %7 : vector<4x256xf32>
    %156 = vector.broadcast %136 : f32 to vector<4x256xf32>
    %157 = arith.mulf %156, %155 : vector<4x256xf32>
    %158 = arith.subf %132, %157 : vector<4x256xf32>
    %159 = vector.broadcast %138 : f32 to vector<4x256xf32>
    %160 = arith.mulf %158, %159 : vector<4x256xf32>
    %161 = vector.broadcast %142 : f32 to vector<4x256xf32>
    %162 = arith.mulf %161, %160 : vector<4x256xf32>
    %163 = vector.broadcast %144 : f32 to vector<4x256xf32>
    %164 = arith.mulf %163, %119 : vector<4x256xf32>
    %165 = arith.addf %162, %164 : vector<4x256xf32>
    %166 = vector.broadcast %146 : f32 to vector<4x256xf32>
    %167 = arith.mulf %166, %78 : vector<4x256xf32>
    %168 = arith.addf %165, %167 : vector<4x256xf32>
    %169 = vector.broadcast %148 : f32 to vector<4x256xf32>
    %170 = arith.mulf %169, %132 : vector<4x256xf32>
    %171 = vector.broadcast %140 : f32 to vector<4x256xf32>
    %172 = arith.mulf %171, %168 : vector<4x256xf32>
    %173 = arith.addf %170, %172 : vector<4x256xf32>
    %c4_i32 = arith.constant 4 : i32
    %174 = arith.index_cast %c4_i32 : i32 to index
    %c0_42 = arith.constant 0 : index
    %175 = memref.load %arg1[%174, %c0_42] : memref<8x8xf32, #tpu.memory_space<smem>>
    %176 = arith.index_cast %c4_i32 : i32 to index
    %c1_43 = arith.constant 1 : index
    %177 = memref.load %arg1[%176, %c1_43] : memref<8x8xf32, #tpu.memory_space<smem>>
    %178 = arith.index_cast %c4_i32 : i32 to index
    %c2_44 = arith.constant 2 : index
    %179 = memref.load %arg1[%178, %c2_44] : memref<8x8xf32, #tpu.memory_space<smem>>
    %180 = arith.index_cast %c4_i32 : i32 to index
    %c3_45 = arith.constant 3 : index
    %181 = memref.load %arg1[%180, %c3_45] : memref<8x8xf32, #tpu.memory_space<smem>>
    %182 = arith.index_cast %c4_i32 : i32 to index
    %c4_46 = arith.constant 4 : index
    %183 = memref.load %arg1[%182, %c4_46] : memref<8x8xf32, #tpu.memory_space<smem>>
    %184 = arith.index_cast %c4_i32 : i32 to index
    %c5_47 = arith.constant 5 : index
    %185 = memref.load %arg1[%184, %c5_47] : memref<8x8xf32, #tpu.memory_space<smem>>
    %186 = arith.index_cast %c4_i32 : i32 to index
    %c6_48 = arith.constant 6 : index
    %187 = memref.load %arg1[%186, %c6_48] : memref<8x8xf32, #tpu.memory_space<smem>>
    %188 = arith.index_cast %c4_i32 : i32 to index
    %c7_49 = arith.constant 7 : index
    %189 = memref.load %arg1[%188, %c7_49] : memref<8x8xf32, #tpu.memory_space<smem>>
    %cst_50 = arith.constant dense<0.000000e+00> : vector<32x256xf32>
    %190 = tpu.matmul %0, %173, %cst_50 {dimension_numbers = #tpu.dot_dimension_numbers<[1], [0], [0], [1], [0, 0, 1, 1], [], []>} : vector<32x4xf32>, vector<4x256xf32>, vector<32x256xf32> -> vector<32x256xf32>
    %191 = arith.addf %190, %4 : vector<32x256xf32>
    %192 = vector.broadcast %175 : f32 to vector<32x256xf32>
    %193 = arith.addf %191, %192 : vector<32x256xf32>
    %194 = math.tanh %193 : vector<32x256xf32>
    %cst_51 = arith.constant dense<0.000000e+00> : vector<4x256xf32>
    %195 = tpu.matmul %1, %194, %cst_51 {dimension_numbers = #tpu.dot_dimension_numbers<[1], [0], [0], [1], [0, 0, 1, 1], [], []>} : vector<4x32xf32>, vector<32x256xf32>, vector<4x256xf32> -> vector<4x256xf32>
    %196 = arith.addf %195, %7 : vector<4x256xf32>
    %197 = vector.broadcast %177 : f32 to vector<4x256xf32>
    %198 = arith.mulf %197, %196 : vector<4x256xf32>
    %199 = arith.subf %173, %198 : vector<4x256xf32>
    %200 = vector.broadcast %179 : f32 to vector<4x256xf32>
    %201 = arith.mulf %199, %200 : vector<4x256xf32>
    %202 = vector.broadcast %183 : f32 to vector<4x256xf32>
    %203 = arith.mulf %202, %201 : vector<4x256xf32>
    %204 = vector.broadcast %185 : f32 to vector<4x256xf32>
    %205 = arith.mulf %204, %160 : vector<4x256xf32>
    %206 = arith.addf %203, %205 : vector<4x256xf32>
    %207 = vector.broadcast %187 : f32 to vector<4x256xf32>
    %208 = arith.mulf %207, %119 : vector<4x256xf32>
    %209 = arith.addf %206, %208 : vector<4x256xf32>
    %210 = vector.broadcast %189 : f32 to vector<4x256xf32>
    %211 = arith.mulf %210, %173 : vector<4x256xf32>
    %212 = vector.broadcast %181 : f32 to vector<4x256xf32>
    %213 = arith.mulf %212, %209 : vector<4x256xf32>
    %214 = arith.addf %211, %213 : vector<4x256xf32>
    %c5_i32 = arith.constant 5 : i32
    %215 = arith.index_cast %c5_i32 : i32 to index
    %c0_52 = arith.constant 0 : index
    %216 = memref.load %arg1[%215, %c0_52] : memref<8x8xf32, #tpu.memory_space<smem>>
    %217 = arith.index_cast %c5_i32 : i32 to index
    %c1_53 = arith.constant 1 : index
    %218 = memref.load %arg1[%217, %c1_53] : memref<8x8xf32, #tpu.memory_space<smem>>
    %219 = arith.index_cast %c5_i32 : i32 to index
    %c2_54 = arith.constant 2 : index
    %220 = memref.load %arg1[%219, %c2_54] : memref<8x8xf32, #tpu.memory_space<smem>>
    %221 = arith.index_cast %c5_i32 : i32 to index
    %c3_55 = arith.constant 3 : index
    %222 = memref.load %arg1[%221, %c3_55] : memref<8x8xf32, #tpu.memory_space<smem>>
    %223 = arith.index_cast %c5_i32 : i32 to index
    %c4_56 = arith.constant 4 : index
    %224 = memref.load %arg1[%223, %c4_56] : memref<8x8xf32, #tpu.memory_space<smem>>
    %225 = arith.index_cast %c5_i32 : i32 to index
    %c5_57 = arith.constant 5 : index
    %226 = memref.load %arg1[%225, %c5_57] : memref<8x8xf32, #tpu.memory_space<smem>>
    %227 = arith.index_cast %c5_i32 : i32 to index
    %c6_58 = arith.constant 6 : index
    %228 = memref.load %arg1[%227, %c6_58] : memref<8x8xf32, #tpu.memory_space<smem>>
    %229 = arith.index_cast %c5_i32 : i32 to index
    %c7_59 = arith.constant 7 : index
    %230 = memref.load %arg1[%229, %c7_59] : memref<8x8xf32, #tpu.memory_space<smem>>
    %cst_60 = arith.constant dense<0.000000e+00> : vector<32x256xf32>
    %231 = tpu.matmul %0, %214, %cst_60 {dimension_numbers = #tpu.dot_dimension_numbers<[1], [0], [0], [1], [0, 0, 1, 1], [], []>} : vector<32x4xf32>, vector<4x256xf32>, vector<32x256xf32> -> vector<32x256xf32>
    %232 = arith.addf %231, %4 : vector<32x256xf32>
    %233 = vector.broadcast %216 : f32 to vector<32x256xf32>
    %234 = arith.addf %232, %233 : vector<32x256xf32>
    %235 = math.tanh %234 : vector<32x256xf32>
    %cst_61 = arith.constant dense<0.000000e+00> : vector<4x256xf32>
    %236 = tpu.matmul %1, %235, %cst_61 {dimension_numbers = #tpu.dot_dimension_numbers<[1], [0], [0], [1], [0, 0, 1, 1], [], []>} : vector<4x32xf32>, vector<32x256xf32>, vector<4x256xf32> -> vector<4x256xf32>
    %237 = arith.addf %236, %7 : vector<4x256xf32>
    %238 = vector.broadcast %218 : f32 to vector<4x256xf32>
    %239 = arith.mulf %238, %237 : vector<4x256xf32>
    %240 = arith.subf %214, %239 : vector<4x256xf32>
    %241 = vector.broadcast %220 : f32 to vector<4x256xf32>
    %242 = arith.mulf %240, %241 : vector<4x256xf32>
    %243 = vector.broadcast %224 : f32 to vector<4x256xf32>
    %244 = arith.mulf %243, %242 : vector<4x256xf32>
    %245 = vector.broadcast %226 : f32 to vector<4x256xf32>
    %246 = arith.mulf %245, %201 : vector<4x256xf32>
    %247 = arith.addf %244, %246 : vector<4x256xf32>
    %248 = vector.broadcast %228 : f32 to vector<4x256xf32>
    %249 = arith.mulf %248, %160 : vector<4x256xf32>
    %250 = arith.addf %247, %249 : vector<4x256xf32>
    %251 = vector.broadcast %230 : f32 to vector<4x256xf32>
    %252 = arith.mulf %251, %214 : vector<4x256xf32>
    %253 = vector.broadcast %222 : f32 to vector<4x256xf32>
    %254 = arith.mulf %253, %250 : vector<4x256xf32>
    %255 = arith.addf %252, %254 : vector<4x256xf32>
    %c6_i32 = arith.constant 6 : i32
    %256 = arith.index_cast %c6_i32 : i32 to index
    %c0_62 = arith.constant 0 : index
    %257 = memref.load %arg1[%256, %c0_62] : memref<8x8xf32, #tpu.memory_space<smem>>
    %258 = arith.index_cast %c6_i32 : i32 to index
    %c1_63 = arith.constant 1 : index
    %259 = memref.load %arg1[%258, %c1_63] : memref<8x8xf32, #tpu.memory_space<smem>>
    %260 = arith.index_cast %c6_i32 : i32 to index
    %c2_64 = arith.constant 2 : index
    %261 = memref.load %arg1[%260, %c2_64] : memref<8x8xf32, #tpu.memory_space<smem>>
    %262 = arith.index_cast %c6_i32 : i32 to index
    %c3_65 = arith.constant 3 : index
    %263 = memref.load %arg1[%262, %c3_65] : memref<8x8xf32, #tpu.memory_space<smem>>
    %264 = arith.index_cast %c6_i32 : i32 to index
    %c4_66 = arith.constant 4 : index
    %265 = memref.load %arg1[%264, %c4_66] : memref<8x8xf32, #tpu.memory_space<smem>>
    %266 = arith.index_cast %c6_i32 : i32 to index
    %c5_67 = arith.constant 5 : index
    %267 = memref.load %arg1[%266, %c5_67] : memref<8x8xf32, #tpu.memory_space<smem>>
    %268 = arith.index_cast %c6_i32 : i32 to index
    %c6_68 = arith.constant 6 : index
    %269 = memref.load %arg1[%268, %c6_68] : memref<8x8xf32, #tpu.memory_space<smem>>
    %270 = arith.index_cast %c6_i32 : i32 to index
    %c7_69 = arith.constant 7 : index
    %271 = memref.load %arg1[%270, %c7_69] : memref<8x8xf32, #tpu.memory_space<smem>>
    %cst_70 = arith.constant dense<0.000000e+00> : vector<32x256xf32>
    %272 = tpu.matmul %0, %255, %cst_70 {dimension_numbers = #tpu.dot_dimension_numbers<[1], [0], [0], [1], [0, 0, 1, 1], [], []>} : vector<32x4xf32>, vector<4x256xf32>, vector<32x256xf32> -> vector<32x256xf32>
    %273 = arith.addf %272, %4 : vector<32x256xf32>
    %274 = vector.broadcast %257 : f32 to vector<32x256xf32>
    %275 = arith.addf %273, %274 : vector<32x256xf32>
    %276 = math.tanh %275 : vector<32x256xf32>
    %cst_71 = arith.constant dense<0.000000e+00> : vector<4x256xf32>
    %277 = tpu.matmul %1, %276, %cst_71 {dimension_numbers = #tpu.dot_dimension_numbers<[1], [0], [0], [1], [0, 0, 1, 1], [], []>} : vector<4x32xf32>, vector<32x256xf32>, vector<4x256xf32> -> vector<4x256xf32>
    %278 = arith.addf %277, %7 : vector<4x256xf32>
    %279 = vector.broadcast %259 : f32 to vector<4x256xf32>
    %280 = arith.mulf %279, %278 : vector<4x256xf32>
    %281 = arith.subf %255, %280 : vector<4x256xf32>
    %282 = vector.broadcast %261 : f32 to vector<4x256xf32>
    %283 = arith.mulf %281, %282 : vector<4x256xf32>
    %284 = vector.broadcast %265 : f32 to vector<4x256xf32>
    %285 = arith.mulf %284, %283 : vector<4x256xf32>
    %286 = vector.broadcast %267 : f32 to vector<4x256xf32>
    %287 = arith.mulf %286, %242 : vector<4x256xf32>
    %288 = arith.addf %285, %287 : vector<4x256xf32>
    %289 = vector.broadcast %269 : f32 to vector<4x256xf32>
    %290 = arith.mulf %289, %201 : vector<4x256xf32>
    %291 = arith.addf %288, %290 : vector<4x256xf32>
    %292 = vector.broadcast %271 : f32 to vector<4x256xf32>
    %293 = arith.mulf %292, %255 : vector<4x256xf32>
    %294 = vector.broadcast %263 : f32 to vector<4x256xf32>
    %295 = arith.mulf %294, %291 : vector<4x256xf32>
    %296 = arith.addf %293, %295 : vector<4x256xf32>
    %c7_i32 = arith.constant 7 : i32
    %297 = arith.index_cast %c7_i32 : i32 to index
    %c0_72 = arith.constant 0 : index
    %298 = memref.load %arg1[%297, %c0_72] : memref<8x8xf32, #tpu.memory_space<smem>>
    %299 = arith.index_cast %c7_i32 : i32 to index
    %c1_73 = arith.constant 1 : index
    %300 = memref.load %arg1[%299, %c1_73] : memref<8x8xf32, #tpu.memory_space<smem>>
    %301 = arith.index_cast %c7_i32 : i32 to index
    %c2_74 = arith.constant 2 : index
    %302 = memref.load %arg1[%301, %c2_74] : memref<8x8xf32, #tpu.memory_space<smem>>
    %303 = arith.index_cast %c7_i32 : i32 to index
    %c3_75 = arith.constant 3 : index
    %304 = memref.load %arg1[%303, %c3_75] : memref<8x8xf32, #tpu.memory_space<smem>>
    %305 = arith.index_cast %c7_i32 : i32 to index
    %c4_76 = arith.constant 4 : index
    %306 = memref.load %arg1[%305, %c4_76] : memref<8x8xf32, #tpu.memory_space<smem>>
    %307 = arith.index_cast %c7_i32 : i32 to index
    %c5_77 = arith.constant 5 : index
    %308 = memref.load %arg1[%307, %c5_77] : memref<8x8xf32, #tpu.memory_space<smem>>
    %309 = arith.index_cast %c7_i32 : i32 to index
    %c6_78 = arith.constant 6 : index
    %310 = memref.load %arg1[%309, %c6_78] : memref<8x8xf32, #tpu.memory_space<smem>>
    %311 = arith.index_cast %c7_i32 : i32 to index
    %c7_79 = arith.constant 7 : index
    %312 = memref.load %arg1[%311, %c7_79] : memref<8x8xf32, #tpu.memory_space<smem>>
    %cst_80 = arith.constant dense<0.000000e+00> : vector<32x256xf32>
    %313 = tpu.matmul %0, %296, %cst_80 {dimension_numbers = #tpu.dot_dimension_numbers<[1], [0], [0], [1], [0, 0, 1, 1], [], []>} : vector<32x4xf32>, vector<4x256xf32>, vector<32x256xf32> -> vector<32x256xf32>
    %314 = arith.addf %313, %4 : vector<32x256xf32>
    %315 = vector.broadcast %298 : f32 to vector<32x256xf32>
    %316 = arith.addf %314, %315 : vector<32x256xf32>
    %317 = math.tanh %316 : vector<32x256xf32>
    %cst_81 = arith.constant dense<0.000000e+00> : vector<4x256xf32>
    %318 = tpu.matmul %1, %317, %cst_81 {dimension_numbers = #tpu.dot_dimension_numbers<[1], [0], [0], [1], [0, 0, 1, 1], [], []>} : vector<4x32xf32>, vector<32x256xf32>, vector<4x256xf32> -> vector<4x256xf32>
    %319 = arith.addf %318, %7 : vector<4x256xf32>
    %320 = vector.broadcast %300 : f32 to vector<4x256xf32>
    %321 = arith.mulf %320, %319 : vector<4x256xf32>
    %322 = arith.subf %296, %321 : vector<4x256xf32>
    %323 = vector.broadcast %302 : f32 to vector<4x256xf32>
    %324 = arith.mulf %322, %323 : vector<4x256xf32>
    %325 = vector.broadcast %306 : f32 to vector<4x256xf32>
    %326 = arith.mulf %325, %324 : vector<4x256xf32>
    %327 = vector.broadcast %308 : f32 to vector<4x256xf32>
    %328 = arith.mulf %327, %283 : vector<4x256xf32>
    %329 = arith.addf %326, %328 : vector<4x256xf32>
    %330 = vector.broadcast %310 : f32 to vector<4x256xf32>
    %331 = arith.mulf %330, %242 : vector<4x256xf32>
    %332 = arith.addf %329, %331 : vector<4x256xf32>
    %333 = vector.broadcast %312 : f32 to vector<4x256xf32>
    %334 = arith.mulf %333, %296 : vector<4x256xf32>
    %335 = vector.broadcast %304 : f32 to vector<4x256xf32>
    %336 = arith.mulf %335, %332 : vector<4x256xf32>
    %337 = arith.addf %334, %336 : vector<4x256xf32>
    %c8_i32 = arith.constant 8 : i32
    %c0_82 = arith.constant 0 : index
    %c0_83 = arith.constant 0 : index
    %338 = vector.load %arg7[%c0_82, %c0_83] : memref<4x256xf32, #tpu.memory_space<vmem>>, vector<4x256xf32>
    tpu.vector_store %arg7[%c0_82, %c0_83], %337 {strides = array<i32>} : memref<4x256xf32, #tpu.memory_space<vmem>>, vector<4x256xf32>,
    return
  }
  func.func @transform_0(%arg0: i32) -> (i32, i32) {
    %c0_i32 = arith.constant 0 : i32
    %c0_i32_0 = arith.constant 0 : i32
    %c0_i32_1 = arith.constant 0 : i32
    return %c0_i32, %c0_i32_0 : i32, i32
  }
  func.func @transform_1(%arg0: i32) -> (i32, i32) {
    %c0_i32 = arith.constant 0 : i32
    %c0_i32_0 = arith.constant 0 : i32
    return %c0_i32, %arg0 : i32, i32
  }
  func.func @transform_2(%arg0: i32) -> (i32, i32) {
    %c0_i32 = arith.constant 0 : i32
    %c0_i32_0 = arith.constant 0 : i32
    %c0_i32_1 = arith.constant 0 : i32
    return %c0_i32, %c0_i32_0 : i32, i32
  }
  func.func @transform_3(%arg0: i32) -> (i32, i32) {
    %c0_i32 = arith.constant 0 : i32
    %c0_i32_0 = arith.constant 0 : i32
    %c0_i32_1 = arith.constant 0 : i32
    return %c0_i32, %c0_i32_0 : i32, i32
  }
  func.func @transform_4(%arg0: i32) -> (i32, i32) {
    %c0_i32 = arith.constant 0 : i32
    %c0_i32_0 = arith.constant 0 : i32
    %c0_i32_1 = arith.constant 0 : i32
    return %c0_i32, %c0_i32_0 : i32, i32
  }
  func.func @transform_5(%arg0: i32) -> (i32, i32) {
    %c0_i32 = arith.constant 0 : i32
    %c0_i32_0 = arith.constant 0 : i32
    %c0_i32_1 = arith.constant 0 : i32
    return %c0_i32, %c0_i32_0 : i32, i32
  }
  func.func @transform_6(%arg0: i32) -> (i32, i32) {
    %c0_i32 = arith.constant 0 : i32
    %c0_i32_0 = arith.constant 0 : i32
    return %c0_i32, %arg0 : i32, i32
  }
}

</mosaic_0001>

<llo_original>
// kernel: _ab_forward.1
$region0: #{_ab_forward.1}
  #allocation0 [shape = 'u32[]', space=smem, size = 0x4, offset = 0x4, fixed_abs, tag = 'smem constant byte address 0x4 - core index']
  #allocation1 [shape = 'u32[144,128]{1,0:T(1,128)}', space=vmem, size = 0x12000, scoped, tag = 'internal scratch']
  %s0 = inlined_call_operand.vmem [shape: f32[8,8], index: 0, kind: input, shape index: {}]
  %s1 = inlined_call_operand.vmem [shape: f32[4,512], index: 1, kind: input, shape index: {}, may-alias: {1,6}]
  %s2 = inlined_call_operand.vmem [shape: f32[32,4], index: 2, kind: input, shape index: {}]
  %s3 = inlined_call_operand.vmem [shape: f32[32,1], index: 3, kind: input, shape index: {}]
  %s4 = inlined_call_operand.vmem [shape: f32[4,32], index: 4, kind: input, shape index: {}]
  %s5 = inlined_call_operand.vmem [shape: f32[4,1], index: 5, kind: input, shape index: {}]
  %s6 = inlined_call_operand.vmem [shape: f32[4,512], index: 6, kind: output, shape index: {}, may-alias: {1,6}]
  %s7 = sld [smem:[#allocation0]]
  $region61: #{_ab_forward.1} parent=0
    _
  %s9 = ssub.s32 1, %s7
  %s10 = scalar_select 0, %s9, %s7
  $region1: #{_ab_forward.1} parent=0
    #allocation2 [shape = 'u8[4096]{0}', space=smem, size = 0x1000, scoped, tag = 'input window, operand 0, single buffered']
    #allocation3 [shape = 's32[2]{0}', space=sflag, size = 0x8, scoped, tag = 'scoped memory for _ab_forward.1']
    %11 = vsyncpa [#allocation3], 0
    loop: start=0, step=1, limit=4
    $region2: #{_ab_forward.1} parent=1 // loop_pre_header
      _
    $region3: #{_ab_forward.1} parent=1 // loop_header
      %s13 = sphi 0, %s17
      %p14 = scmp.ge.s32.totalorder %s13, 4
      %s21 = sphi 0, %s21
      %s23 = sphi 0, %s21
      %s24 = sphi 0, %s23
      %s38 = sphi 0, %s24
      %s44 = sphi 0, %s46
      %s47 = sphi 0, %s44
      %s48 = sphi 0, %s47
      %s64 = sphi 0, %s48
      %s68 = sphi 0, %s68
      %s70 = sphi 0, %s68
      %s71 = sphi 0, %s70
      %s85 = sphi 0, %s71
      %s89 = sphi 0, %s89
      %s91 = sphi 0, %s89
      %s92 = sphi 0, %s91
      %s106 = sphi 0, %s92
      %s110 = sphi 0, %s110
      %s112 = sphi 0, %s110
      %s113 = sphi 0, %s112
      %s127 = sphi 0, %s113
      %s131 = sphi 0, %s131
      %s133 = sphi 0, %s131
      %s134 = sphi 0, %s133
      %s148 = sphi 0, %s134
      %s154 = sphi 0, %s156
      %s157 = sphi 0, %s154
      %s158 = sphi 0, %s157
      %s174 = sphi 0, %s158
    $region4: #{_ab_forward.1} parent=1 // loop_header_branch
      %16 = sbr.rel (%p14) target = $region8
    $region5: #{_ab_forward.1} parent=1 // loop_body
      %s18 = ssub.s32 %s13, 1
      %s19 = ssub.s32 %s13, 2
      %s20 = sadd.s32 %s13, 1
      %s22 = sadd.s32 %s21, 1
      %p25 = scmp.eq.s32.totalorder %s13, 1
      %p26 = scmp.ne.s32.totalorder %s21, %s23
      %p27 = scmp.eq.s32.totalorder %s13, 0
      %p28 = por %p26, %p27
      %p29 = scmp.ne.s32.totalorder %s21, %s23
      %p30 = scmp.eq.s32.totalorder %s18, 1
      %p31 = por %p29, %p30
      %p32 = scmp.ne.s32.totalorder %s23, %s24
      %p33 = scmp.eq.s32.totalorder %s18, 0
      %p34 = por %p32, %p33
      %p35 = scmp.ne.s32.totalorder %s23, %s24
      %p36 = scmp.eq.s32.totalorder %s19, 1
      %p37 = por %p35, %p36
      %p39 = scmp.ne.s32.totalorder %s24, %s38
      %p40 = scmp.eq.s32.totalorder %s19, 0
      %p41 = por %p39, %p40
      %s42 = ssub.s32 %s13, %s20
      %p43 = scmp.eq.s32.totalorder %s42, 0
      %s45 = sadd.s32 %s44, 1
      %s46 = scalar_select %p43, %s44, %s45
      %p49 = pneg %p43
      %p50 = scmp.eq.s32.totalorder %s13, 1
      %p51 = por %p49, %p50
      %p52 = scmp.ne.s32.totalorder %s44, %s47
      %p53 = scmp.eq.s32.totalorder %s13, 0
      %p54 = por %p52, %p53
      %p55 = scmp.ne.s32.totalorder %s44, %s47
      %p56 = scmp.eq.s32.totalorder %s18, 1
      %p57 = por %p55, %p56
      %p58 = scmp.ne.s32.totalorder %s47, %s48
      %p59 = scmp.eq.s32.totalorder %s18, 0
      %p60 = por %p58, %p59
      %p61 = scmp.ne.s32.totalorder %s47, %s48
      %p62 = scmp.eq.s32.totalorder %s19, 1
      %p63 = por %p61, %p62
      %p65 = scmp.ne.s32.totalorder %s48, %s64
      %p66 = scmp.eq.s32.totalorder %s19, 0
      %p67 = por %p65, %p66
      %s69 = sadd.s32 %s68, 1
      %p72 = scmp.eq.s32.totalorder %s13, 1
      %p73 = scmp.ne.s32.totalorder %s68, %s70
      %p74 = scmp.eq.s32.totalorder %s13, 0
      %p75 = por %p73, %p74
      %p76 = scmp.ne.s32.totalorder %s68, %s70
      %p77 = scmp.eq.s32.totalorder %s18, 1
      %p78 = por %p76, %p77
      %p79 = scmp.ne.s32.totalorder %s70, %s71
      %p80 = scmp.eq.s32.totalorder %s18, 0
      %p81 = por %p79, %p80
      %p82 = scmp.ne.s32.totalorder %s70, %s71
      %p83 = scmp.eq.s32.totalorder %s19, 1
      %p84 = por %p82, %p83
      %p86 = scmp.ne.s32.totalorder %s71, %s85
      %p87 = scmp.eq.s32.totalorder %s19, 0
      %p88 = por %p86, %p87
      %s90 = sadd.s32 %s89, 1
      %p93 = scmp.eq.s32.totalorder %s13, 1
      %p94 = scmp.ne.s32.totalorder %s89, %s91
      %p95 = scmp.eq.s32.totalorder %s13, 0
      %p96 = por %p94, %p95
      %p97 = scmp.ne.s32.totalorder %s89, %s91
      %p98 = scmp.eq.s32.totalorder %s18, 1
      %p99 = por %p97, %p98
      %p100 = scmp.ne.s32.totalorder %s91, %s92
      %p101 = scmp.eq.s32.totalorder %s18, 0
      %p102 = por %p100, %p101
      %p103 = scmp.ne.s32.totalorder %s91, %s92
      %p104 = scmp.eq.s32.totalorder %s19, 1
      %p105 = por %p103, %p104
      %p107 = scmp.ne.s32.totalorder %s92, %s106
      %p108 = scmp.eq.s32.totalorder %s19, 0
      %p109 = por %p107, %p108
      %s111 = sadd.s32 %s110, 1
      %p114 = scmp.eq.s32.totalorder %s13, 1
      %p115 = scmp.ne.s32.totalorder %s110, %s112
      %p116 = scmp.eq.s32.totalorder %s13, 0
      %p117 = por %p115, %p116
      %p118 = scmp.ne.s32.totalorder %s110, %s112
      %p119 = scmp.eq.s32.totalorder %s18, 1
      %p120 = por %p118, %p119
      %p121 = scmp.ne.s32.totalorder %s112, %s113
      %p122 = scmp.eq.s32.totalorder %s18, 0
      %p123 = por %p121, %p122
      %p124 = scmp.ne.s32.totalorder %s112, %s113
      %p125 = scmp.eq.s32.totalorder %s19, 1
      %p126 = por %p124, %p125
      %p128 = scmp.ne.s32.totalorder %s113, %s127
      %p129 = scmp.eq.s32.totalorder %s19, 0
      %p130 = por %p128, %p129
      %s132 = sadd.s32 %s131, 1
      %p135 = scmp.eq.s32.totalorder %s13, 1
      %p136 = scmp.ne.s32.totalorder %s131, %s133
      %p137 = scmp.eq.s32.totalorder %s13, 0
      %p138 = por %p136, %p137
      %p139 = scmp.ne.s32.totalorder %s131, %s133
      %p140 = scmp.eq.s32.totalorder %s18, 1
      %p141 = por %p139, %p140
      %p142 = scmp.ne.s32.totalorder %s133, %s134
      %p143 = scmp.eq.s32.totalorder %s18, 0
      %p144 = por %p142, %p143
      %p145 = scmp.ne.s32.totalorder %s133, %s134
      %p146 = scmp.eq.s32.totalorder %s19, 1
      %p147 = por %p145, %p146
      %p149 = scmp.ne.s32.totalorder %s134, %s148
      %p150 = scmp.eq.s32.totalorder %s19, 0
      %p151 = por %p149, %p150
      %s152 = ssub.s32 %s13, %s20
      %p153 = scmp.eq.s32.totalorder %s152, 0
      %s155 = sadd.s32 %s154, 1
      %s156 = scalar_select %p153, %s154, %s155
      %p159 = pneg %p153
      %p160 = scmp.eq.s32.totalorder %s13, 1
      %p161 = por %p159, %p160
      %p162 = scmp.ne.s32.totalorder %s154, %s157
      %p163 = scmp.eq.s32.totalorder %s13, 0
      %p164 = por %p162, %p163
      %p165 = scmp.ne.s32.totalorder %s154, %s157
      %p166 = scmp.eq.s32.totalorder %s18, 1
      %p167 = por %p165, %p166
      %p168 = scmp.ne.s32.totalorder %s157, %s158
      %p169 = scmp.eq.s32.totalorder %s18, 0
      %p170 = por %p168, %p169
      %p171 = scmp.ne.s32.totalorder %s157, %s158
      %p172 = scmp.eq.s32.totalorder %s19, 1
      %p173 = por %p171, %p172
      %p175 = scmp.ne.s32.totalorder %s158, %s174
      %p176 = scmp.eq.s32.totalorder %s19, 0
      %p177 = por %p175, %p176
      %p178 = scmp.le.s32.totalorder 1, %s13
      %p179 = scmp.lt.s32.totalorder %s13, 3
      %p180 = pnand %p178, %p179
      %p181 = pneg %p180
      // Predicated region
      $region9: #{_ab_forward.1} parent=5 // pred_check
        _
      $region10: #{_ab_forward.1} parent=5 // pred_check_branch
        %183 = sbr.rel (%p180) target = $region12
      $region11: #{_ab_forward.1} parent=5 // pred_region
        %s184 = ssub.s32 %s13, 1
        // Predicated region
        $region13: #{_ab_forward.1} parent=11 // pred_check
          %p185 = pneg %p34
        $region14: #{_ab_forward.1} parent=11 // pred_check_branch
          %187 = sbr.rel (%p185) target = $region16
        $region15: #{_ab_forward.1} parent=11 // pred_region
          %s189 = ssub.s32 128, 128
          %190 = vsyncadd [#allocation3], %s189
          %s192 = sshll.u32 %s0, 4
          %s193 = int_to_ptr.vmem [resolvable:$true] %s192
          %195 = dma.vmem_to_smem %s193, 128, [#allocation2], [#allocation3]
        $region16: #{_ab_forward.1} parent=11 // pred_fallthru
          _
        // Predicated region
        $region17: #{_ab_forward.1} parent=11 // pred_check
          %p196 = pneg %p81
        $region18: #{_ab_forward.1} parent=11 // pred_check_branch
          %198 = sbr.rel (%p196) target = $region20
        $region19: #{_ab_forward.1} parent=11 // pred_region
          _
        $region20: #{_ab_forward.1} parent=11 // pred_fallthru
          _
        // Predicated region
        $region21: #{_ab_forward.1} parent=11 // pred_check
          %p199 = pneg %p102
        $region22: #{_ab_forward.1} parent=11 // pred_check_branch
          %201 = sbr.rel (%p199) target = $region24
        $region23: #{_ab_forward.1} parent=11 // pred_region
          _
        $region24: #{_ab_forward.1} parent=11 // pred_fallthru
          _
        // Predicated region
        $region25: #{_ab_forward.1} parent=11 // pred_check
          %p202 = pneg %p123
        $region26: #{_ab_forward.1} parent=11 // pred_check_branch
          %204 = sbr.rel (%p202) target = $region28
        $region27: #{_ab_forward.1} parent=11 // pred_region
          _
        $region28: #{_ab_forward.1} parent=11 // pred_fallthru
          _
        // Predicated region
        $region29: #{_ab_forward.1} parent=11 // pred_check
          %p205 = pneg %p144
        $region30: #{_ab_forward.1} parent=11 // pred_check_branch
          %207 = sbr.rel (%p205) target = $region32
        $region31: #{_ab_forward.1} parent=11 // pred_region
          _
        $region32: #{_ab_forward.1} parent=11 // pred_fallthru
          _
      $region12: #{_ab_forward.1} parent=5 // pred_fallthru
        _
      %p208 = scmp.lt.s32.totalorder %s13, 2
      // Predicated region
      $region33: #{_ab_forward.1} parent=5 // pred_check
        %p209 = pneg %p208
      $region34: #{_ab_forward.1} parent=5 // pred_check_branch
        %211 = sbr.rel (%p209) target = $region36
      $region35: #{_ab_forward.1} parent=5 // pred_region
        // Predicated region
        $region37: #{_ab_forward.1} parent=35 // pred_check
          %p212 = pneg %p54
        $region38: #{_ab_forward.1} parent=35 // pred_check_branch
          %214 = sbr.rel (%p212) target = $region40
        $region39: #{_ab_forward.1} parent=35 // pred_region
          %s215 = smul.u32 2, %s13
          %p216 = scmp.lt.s32.totalorder %s215, 3
          %s217 = scalar_select %p216, %s215, 3
          %s218 = smul.addr %s217, 4
          %s219 = scalar_lea.vmem %s1, %s218
          %s220 = smul.u32 2, %s13
        $region40: #{_ab_forward.1} parent=35 // pred_fallthru
          _
      $region36: #{_ab_forward.1} parent=5 // pred_fallthru
        _
      %p221 = scmp.le.s32.totalorder 1, %s13
      %p222 = scmp.lt.s32.totalorder %s13, 3
      %p223 = pnand %p221, %p222
      %p224 = pneg %p223
      // Predicated region
      $region41: #{_ab_forward.1} parent=5 // pred_check
        _
      $region42: #{_ab_forward.1} parent=5 // pred_check_branch
        %226 = sbr.rel (%p223) target = $region44
      $region43: #{_ab_forward.1} parent=5 // pred_region
        %s227 = ssub.s32 %s13, 1
        // Predicated region
        $region45: #{_ab_forward.1} parent=43 // pred_check
          %p228 = pneg %p34
        $region46: #{_ab_forward.1} parent=43 // pred_check_branch
          %230 = sbr.rel (%p228) target = $region48
        $region47: #{_ab_forward.1} parent=43 // pred_region
          %231 = dma.done [#allocation3], 128
        $region48: #{_ab_forward.1} parent=43 // pred_fallthru
          _
        %232 = sfence
        %p233 = pneg %p34
        %p234 = pneg %p31
        %s235 = smul.u32 2, %s18
        %p236 = scmp.lt.s32.totalorder %s235, 3
        %s237 = scalar_select %p236, %s235, 3
        %s238 = smul.addr %s237, 4
        %s239 = scalar_lea.vmem %s1, %s238
        %p240 = pneg %p60
        %p241 = pneg %p57
        %p242 = pneg %p81
        %p243 = pneg %p78
        %p244 = pneg %p102
        %p245 = pneg %p99
        %p246 = pneg %p123
        %p247 = pneg %p120
        %p248 = pneg %p144
        %p249 = pneg %p141
        %p250 = pneg %p170
        %p251 = pneg %p167
        %s252 = smul.u32 2, %s18
        %p253 = scmp.lt.s32.totalorder %s252, 3
        %s254 = scalar_select %p253, %s252, 3
        %s255 = smul.addr %s254, 4
        %s256 = scalar_lea.vmem %s6, %s255
        %s257 = smul.u32 2, %s18
        %p258 = scmp.lt.s32.totalorder %s257, 3
        %s259 = scalar_select %p258, %s257, 3
        %s260 = smul.addr %s259, 4
        %s261 = scalar_lea.vmem %s1, %s260
        %s262 = smul.u32 2, %s18
        %s263 = smul.u32 2, %s18
        %p264 = scmp.lt.s32.totalorder %s263, 3
        %s265 = scalar_select %p264, %s263, 3
        %s266 = smul.addr %s265, 4
        %s267 = scalar_lea.vmem %s6, %s266
        %s268 = smul.u32 2, %s18
        %v269 = vld [vmem:[%s2] sm:$0xff]
        %v270 = vld [vmem:[%s2 + $0x8] sm:$0xff]
        %v271 = vld [vmem:[%s2 + $0x10] sm:$0xff]
        %v272 = vld [vmem:[%s2 + $0x18] sm:$0xff]
        %v273 = vld [vmem:[%s4] sm:$0xf]
        %v274 = vld [vmem:[%s3] sm:$0xff]
        %v275 = vld [vmem:[%s3 + $0x8] sm:$0xff]
        %v276 = vld [vmem:[%s3 + $0x10] sm:$0xff]
        %v277 = vld [vmem:[%s3 + $0x18] sm:$0xff]
        %279 = vset.pattern.permute.xlu0 0
        %280 = vperm.xlu0 %279, %v274
        %v281 = vpop.permute.xlu0 %280
        %284 = vset.pattern.permute.xlu0 0
        %285 = vperm.xlu0 %284, %v275
        %v286 = vpop.permute.xlu0 %285
        %289 = vset.pattern.permute.xlu0 0
        %290 = vperm.xlu0 %289, %v276
        %v291 = vpop.permute.xlu0 %290
        %294 = vset.pattern.permute.xlu0 0
        %295 = vperm.xlu0 %294, %v277
        %v296 = vpop.permute.xlu0 %295
        %v298 = vld [vmem:[%s5] sm:$0xf]
        %300 = vset.pattern.permute.xlu0 0
        %301 = vperm.xlu0 %300, %v298
        %v302 = vpop.permute.xlu0 %301
        %v304 = vld [vmem:[%s261] sm:$0xff]
        %s305 = sld [smem:[#allocation2]]
        %s306 = sld [smem:[#allocation2 + $0x1]]
        %s307 = sld [smem:[#allocation2 + $0x2]]
        %s308 = sld [smem:[#allocation2 + $0x3]]
        %s309 = sld [smem:[#allocation2 + $0x4]]
        %s310 = sld [smem:[#allocation2 + $0x5]]
        %s311 = sld [smem:[#allocation2 + $0x6]]
        %s312 = sld [smem:[#allocation2 + $0x7]]
        %v314 = vcombine.high %v304, %v304
        %vm315 = vcmask 31744
        %v317 = vsel %vm315, %v269, 0
        %v320 = vsel %vm315, %v270, 0
        %v323 = vsel %vm315, %v271, 0
        %v326 = vsel %vm315, %v272, 0
        %vm328 = vcmask 1043456
        %v329 = vsel %vm328, %v304, 0
        %v331 = vsel %vm328, %v314, 0
        %333 = vmatprep.subr.mxu0 %v331
        %334 = vmatpush1.msra.mxu0 %v329
        %335 = vmatprep.subr.mxu0 0.0
        %336 = vmatpush1.msra.mxu0 0.0
        %337 = vmatprep.subr.mxu0 0.0
        %338 = vmatpush1.msra.mxu0 0.0
        %339 = vmatprep.subr.mxu0 0.0
        %340 = vmatpush1.msra.mxu0 0.0
        %341 = vmatprep.subr.mxu0 0.0
        %342 = vmatpush1.msra.mxu0 0.0
        %343 = vmatprep.subr.mxu0 0.0
        %344 = vmatpush1.msra.mxu0 0.0
        %345 = vmatprep.subr.mxu0 0.0
        %346 = vmatpush1.msra.mxu0 0.0
        %347 = vmatprep.subr.mxu0 0.0
        %348 = vmatpush1.msra.mxu0 0.0
        %349 = vmatprep.subr.mxu0 0.0
        %350 = vmatpush1.msra.mxu0 0.0
        %351 = vmatprep.subr.mxu0 0.0
        %352 = vmatpush1.msra.mxu0 0.0
        %353 = vmatprep.subr.mxu0 0.0
        %354 = vmatpush1.msra.mxu0 0.0
        %355 = vmatprep.subr.mxu0 0.0
        %356 = vmatpush1.msra.mxu0 0.0
        %357 = vmatprep.subr.mxu0 0.0
        %358 = vmatpush1.msra.mxu0 0.0
        %359 = vmatprep.subr.mxu0 0.0
        %360 = vmatpush1.msra.mxu0 0.0
        %361 = vmatprep.subr.mxu0 0.0
        %362 = vmatpush1.msra.mxu0 0.0
        %363 = vmatprep.subr.mxu0 0.0
        %364 = vmatpush1.msra.mxu0 0.0
        %365 = vmatprep.subr.mxu0 0.0
        %366 = vmatpush1.msra.mxu0 0.0
        %367 = vmatprep.subr.mxu0 0.0
        %368 = vmatpush1.msra.mxu0 0.0
        %369 = vmatprep.subr.mxu0 0.0
        %370 = vmatpush1.msra.mxu0 0.0
        %371 = vmatprep.subr.mxu0 0.0
        %372 = vmatpush1.msra.mxu0 0.0
        %373 = vmatprep.subr.mxu0 0.0
        %374 = vmatpush1.msra.mxu0 0.0
        %375 = vmatprep.subr.mxu0 0.0
        %376 = vmatpush1.msra.mxu0 0.0
        %377 = vmatprep.subr.mxu0 0.0
        %378 = vmatpush1.msra.mxu0 0.0
        %379 = vmatprep.subr.mxu0 0.0
        %380 = vmatpush1.msra.mxu0 0.0
        %381 = vmatprep.subr.mxu0 0.0
        %382 = vmatpush1.msra.mxu0 0.0
        %383 = vmatprep.subr.mxu0 0.0
        %384 = vmatpush1.msra.mxu0 0.0
        %385 = vmatprep.subr.mxu0 0.0
        %386 = vmatpush1.msra.mxu0 0.0
        %387 = vmatprep.subr.mxu0 0.0
        %388 = vmatpush1.msra.mxu0 0.0
        %389 = vmatprep.subr.mxu0 0.0
        %390 = vmatpush1.msra.mxu0 0.0
        %391 = vmatprep.subr.mxu0 0.0
        %392 = vmatpush1.msra.mxu0 0.0
        %393 = vmatprep.subr.mxu0 0.0
        %394 = vmatpush1.msra.mxu0 0.0
        %395 = vmatprep.subr.mxu0 0.0
        %396 = vmatpush1.msra.mxu0 0.0
        %397 = vmatprep.mubr.f32.mxu0 0.0
        %398 = vmatmul.mubr.f32.gmra.mrb[0].mxu0 %v317
        %v399 = vpop.f32.mrb[0].mxu0
        %v400 = vadd.f32 %v281, %v399
        %v401 = vpop.f32.mrb[0].mxu0
        %v402 = vadd.f32 %v281, %v401
        %403 = vmatprep.mubr.f32.mxu0 0.0
        %404 = vmatmul.mubr.f32.gmra.mrb[0].mxu0 %v320
        %v405 = vpop.f32.mrb[0].mxu0
        %v406 = vadd.f32 %v286, %v405
        %v407 = vpop.f32.mrb[0].mxu0
        %v408 = vadd.f32 %v286, %v407
        %409 = vmatprep.mubr.f32.mxu0 0.0
        %410 = vmatmul.mubr.f32.gmra.mrb[0].mxu0 %v323
        %v411 = vpop.f32.mrb[0].mxu0
        %v412 = vadd.f32 %v291, %v411
        %v413 = vpop.f32.mrb[0].mxu0
        %v414 = vadd.f32 %v291, %v413
        %415 = vmatprep.mubr.f32.mxu0 0.0
        %416 = vmatmul.mubr.f32.gmra.mrb[0].mxu0 %v326
        %v417 = vpop.f32.mrb[0].mxu0
        %v418 = vadd.f32 %v296, %v417
        %v419 = vpop.f32.mrb[0].mxu0
        %v420 = vadd.f32 %v296, %v419
        %421 = vdwg.mxu0
        %v422 = vstv %s305
        %v423 = vadd.f32 %v400, %v422
        %v424 = vadd.f32 %v402, %v422
        %v425 = vadd.f32 %v406, %v422
        %v426 = vadd.f32 %v408, %v422
        %v427 = vadd.f32 %v412, %v422
        %v428 = vadd.f32 %v414, %v422
        %v429 = vadd.f32 %v418, %v422
        %v430 = vadd.f32 %v420, %v422
        %v431 = vtanh.pop %v423
        %v432 = vtanh.pop %v424
        %v433 = vtanh.pop %v425
        %v434 = vtanh.pop %v426
        %v435 = vtanh.pop %v427
        %v436 = vtanh.pop %v428
        %v437 = vtanh.pop %v429
        %v438 = vtanh.pop %v430
        %vm439 = vcmask 261120
        %v441 = vsel %vm439, %v273, 0
        %443 = vmatprep.subr.mxu0 %v432
        %444 = vmatpush1.msra.mxu0 %v431
        %445 = vmatprep.subr.mxu0 %v434
        %446 = vmatpush1.msra.mxu0 %v433
        %447 = vmatprep.subr.mxu0 %v436
        %448 = vmatpush1.msra.mxu0 %v435
        %449 = vmatprep.subr.mxu0 %v438
        %450 = vmatpush1.msra.mxu0 %v437
        %451 = vmatprep.subr.mxu0 0.0
        %452 = vmatpush1.msra.mxu0 0.0
        %453 = vmatprep.subr.mxu0 0.0
        %454 = vmatpush1.msra.mxu0 0.0
        %455 = vmatprep.subr.mxu0 0.0
        %456 = vmatpush1.msra.mxu0 0.0
        %457 = vmatprep.subr.mxu0 0.0
        %458 = vmatpush1.msra.mxu0 0.0
        %459 = vmatprep.subr.mxu0 0.0
        %460 = vmatpush1.msra.mxu0 0.0
        %461 = vmatprep.subr.mxu0 0.0
        %462 = vmatpush1.msra.mxu0 0.0
        %463 = vmatprep.subr.mxu0 0.0
        %464 = vmatpush1.msra.mxu0 0.0
        %465 = vmatprep.subr.mxu0 0.0
        %466 = vmatpush1.msra.mxu0 0.0
        %467 = vmatprep.subr.mxu0 0.0
        %468 = vmatpush1.msra.mxu0 0.0
        %469 = vmatprep.subr.mxu0 0.0
        %470 = vmatpush1.msra.mxu0 0.0
        %471 = vmatprep.subr.mxu0 0.0
        %472 = vmatpush1.msra.mxu0 0.0
        %473 = vmatprep.subr.mxu0 0.0
        %474 = vmatpush1.msra.mxu0 0.0
        %475 = vmatprep.subr.mxu0 0.0
        %476 = vmatpush1.msra.mxu0 0.0
        %477 = vmatprep.subr.mxu0 0.0
        %478 = vmatpush1.msra.mxu0 0.0
        %479 = vmatprep.subr.mxu0 0.0
        %480 = vmatpush1.msra.mxu0 0.0
        %481 = vmatprep.subr.mxu0 0.0
        %482 = vmatpush1.msra.mxu0 0.0
        %483 = vmatprep.subr.mxu0 0.0
        %484 = vmatpush1.msra.mxu0 0.0
        %485 = vmatprep.subr.mxu0 0.0
        %486 = vmatpush1.msra.mxu0 0.0
        %487 = vmatprep.subr.mxu0 0.0
        %488 = vmatpush1.msra.mxu0 0.0
        %489 = vmatprep.subr.mxu0 0.0
        %490 = vmatpush1.msra.mxu0 0.0
        %491 = vmatprep.subr.mxu0 0.0
        %492 = vmatpush1.msra.mxu0 0.0
        %493 = vmatprep.subr.mxu0 0.0
        %494 = vmatpush1.msra.mxu0 0.0
        %495 = vmatprep.subr.mxu0 0.0
        %496 = vmatpush1.msra.mxu0 0.0
        %497 = vmatprep.subr.mxu0 0.0
        %498 = vmatpush1.msra.mxu0 0.0
        %499 = vmatprep.subr.mxu0 0.0
        %500 = vmatpush1.msra.mxu0 0.0
        %501 = vmatprep.subr.mxu0 0.0
        %502 = vmatpush1.msra.mxu0 0.0
        %503 = vmatprep.subr.mxu0 0.0
        %504 = vmatpush1.msra.mxu0 0.0
        %505 = vmatprep.subr.mxu0 0.0
        %506 = vmatpush1.msra.mxu0 0.0
        %507 = vmatprep.mubr.f32.mxu0 0.0
        %508 = vmatmul.mubr.f32.gmra.mrb[0].mxu0 %v441
        %v509 = vpop.f32.mrb[0].mxu0
        %v510 = vadd.f32 %v302, %v509
        %v511 = vpop.f32.mrb[0].mxu0
        %v512 = vadd.f32 %v302, %v511
        %513 = vdwg.mxu0
        %v514 = vstv %s306
        %v515 = vmul.f32 %v514, %v510
        %v516 = vmul.f32 %v514, %v512
        %v519 = vcombine.low %v515, %v516
        %v521 = vsub.f32 %v304, %v519
        %v522 = vstv %s307
        %v523 = vmul.f32 %v521, %v522
        %v524 = vstv %s309
        %v525 = vmul.f32 %v524, %v523
        %v526 = vstv %s310
        %v527 = vmul.f32 %v526, 0.0
        %v528 = vadd.f32 %v525, %v527
        %v529 = vstv %s311
        %v530 = vmul.f32 %v529, 0.0
        %v531 = vadd.f32 %v528, %v530
        %v532 = vstv %s312
        %v533 = vmul.f32 %v532, %v304
        %v534 = vstv %s308
        %v535 = vmul.f32 %v534, %v531
        %v536 = vadd.f32 %v533, %v535
        %s537 = sld [smem:[#allocation2 + $0x80]]
        %s538 = sld [smem:[#allocation2 + $0x81]]
        %s539 = sld [smem:[#allocation2 + $0x82]]
        %s540 = sld [smem:[#allocation2 + $0x83]]
        %s541 = sld [smem:[#allocation2 + $0x84]]
        %s542 = sld [smem:[#allocation2 + $0x85]]
        %s543 = sld [smem:[#allocation2 + $0x86]]
        %s544 = sld [smem:[#allocation2 + $0x87]]
        %v546 = vcombine.high %v536, %v536
        %v547 = vsel %vm328, %v536, 0
        %v549 = vsel %vm328, %v546, 0
        %551 = vmatprep.subr.mxu0 %v549
        %552 = vmatpush1.msra.mxu0 %v547
        %553 = vmatprep.subr.mxu0 0.0
        %554 = vmatpush1.msra.mxu0 0.0
        %555 = vmatprep.subr.mxu0 0.0
        %556 = vmatpush1.msra.mxu0 0.0
        %557 = vmatprep.subr.mxu0 0.0
        %558 = vmatpush1.msra.mxu0 0.0
        %559 = vmatprep.subr.mxu0 0.0
        %560 = vmatpush1.msra.mxu0 0.0
        %561 = vmatprep.subr.mxu0 0.0
        %562 = vmatpush1.msra.mxu0 0.0
        %563 = vmatprep.subr.mxu0 0.0
        %564 = vmatpush1.msra.mxu0 0.0
        %565 = vmatprep.subr.mxu0 0.0
        %566 = vmatpush1.msra.mxu0 0.0
        %567 = vmatprep.subr.mxu0 0.0
        %568 = vmatpush1.msra.mxu0 0.0
        %569 = vmatprep.subr.mxu0 0.0
        %570 = vmatpush1.msra.mxu0 0.0
        %571 = vmatprep.subr.mxu0 0.0
        %572 = vmatpush1.msra.mxu0 0.0
        %573 = vmatprep.subr.mxu0 0.0
        %574 = vmatpush1.msra.mxu0 0.0
        %575 = vmatprep.subr.mxu0 0.0
        %576 = vmatpush1.msra.mxu0 0.0
        %577 = vmatprep.subr.mxu0 0.0
        %578 = vmatpush1.msra.mxu0 0.0
        %579 = vmatprep.subr.mxu0 0.0
        %580 = vmatpush1.msra.mxu0 0.0
        %581 = vmatprep.subr.mxu0 0.0
        %582 = vmatpush1.msra.mxu0 0.0
        %583 = vmatprep.subr.mxu0 0.0
        %584 = vmatpush1.msra.mxu0 0.0
        %585 = vmatprep.subr.mxu0 0.0
        %586 = vmatpush1.msra.mxu0 0.0
        %587 = vmatprep.subr.mxu0 0.0
        %588 = vmatpush1.msra.mxu0 0.0
        %589 = vmatprep.subr.mxu0 0.0
        %590 = vmatpush1.msra.mxu0 0.0
        %591 = vmatprep.subr.mxu0 0.0
        %592 = vmatpush1.msra.mxu0 0.0
        %593 = vmatprep.subr.mxu0 0.0
        %594 = vmatpush1.msra.mxu0 0.0
        %595 = vmatprep.subr.mxu0 0.0
        %596 = vmatpush1.msra.mxu0 0.0
        %597 = vmatprep.subr.mxu0 0.0
        %598 = vmatpush1.msra.mxu0 0.0
        %599 = vmatprep.subr.mxu0 0.0
        %600 = vmatpush1.msra.mxu0 0.0
        %601 = vmatprep.subr.mxu0 0.0
        %602 = vmatpush1.msra.mxu0 0.0
        %603 = vmatprep.subr.mxu0 0.0
        %604 = vmatpush1.msra.mxu0 0.0
        %605 = vmatprep.subr.mxu0 0.0
        %606 = vmatpush1.msra.mxu0 0.0
        %607 = vmatprep.subr.mxu0 0.0
        %608 = vmatpush1.msra.mxu0 0.0
        %609 = vmatprep.subr.mxu0 0.0
        %610 = vmatpush1.msra.mxu0 0.0
        %611 = vmatprep.subr.mxu0 0.0
        %612 = vmatpush1.msra.mxu0 0.0
        %613 = vmatprep.subr.mxu0 0.0
        %614 = vmatpush1.msra.mxu0 0.0
        %615 = vmatprep.mubr.f32.mxu0 0.0
        %616 = vmatmul.mubr.f32.gmra.mrb[0].mxu0 %v317
        %v617 = vpop.f32.mrb[0].mxu0
        %v618 = vadd.f32 %v281, %v617
        %v619 = vpop.f32.mrb[0].mxu0
        %v620 = vadd.f32 %v281, %v619
        %621 = vmatprep.mubr.f32.mxu0 0.0
        %622 = vmatmul.mubr.f32.gmra.mrb[0].mxu0 %v320
        %v623 = vpop.f32.mrb[0].mxu0
        %v624 = vadd.f32 %v286, %v623
        %v625 = vpop.f32.mrb[0].mxu0
        %v626 = vadd.f32 %v286, %v625
        %627 = vmatprep.mubr.f32.mxu0 0.0
        %628 = vmatmul.mubr.f32.gmra.mrb[0].mxu0 %v323
        %v629 = vpop.f32.mrb[0].mxu0
        %v630 = vadd.f32 %v291, %v629
        %v631 = vpop.f32.mrb[0].mxu0
        %v632 = vadd.f32 %v291, %v631
        %633 = vmatprep.mubr.f32.mxu0 0.0
        %634 = vmatmul.mubr.f32.gmra.mrb[0].mxu0 %v326
        %v635 = vpop.f32.mrb[0].mxu0
        %v636 = vadd.f32 %v296, %v635
        %v637 = vpop.f32.mrb[0].mxu0
        %v638 = vadd.f32 %v296, %v637
        %639 = vdwg.mxu0
        %v640 = vstv %s537
        %v641 = vadd.f32 %v618, %v640
        %v642 = vadd.f32 %v620, %v640
        %v643 = vadd.f32 %v624, %v640
        %v644 = vadd.f32 %v626, %v640
        %v645 = vadd.f32 %v630, %v640
        %v646 = vadd.f32 %v632, %v640
        %v647 = vadd.f32 %v636, %v640
        %v648 = vadd.f32 %v638, %v640
        %v649 = vtanh.pop %v641
        %v650 = vtanh.pop %v642
        %v651 = vtanh.pop %v643
        %v652 = vtanh.pop %v644
        %v653 = vtanh.pop %v645
        %v654 = vtanh.pop %v646
        %v655 = vtanh.pop %v647
        %v656 = vtanh.pop %v648
        %657 = vmatprep.subr.mxu0 %v650
        %658 = vmatpush1.msra.mxu0 %v649
        %659 = vmatprep.subr.mxu0 %v652
        %660 = vmatpush1.msra.mxu0 %v651
        %661 = vmatprep.subr.mxu0 %v654
        %662 = vmatpush1.msra.mxu0 %v653
        %663 = vmatprep.subr.mxu0 %v656
        %664 = vmatpush1.msra.mxu0 %v655
        %665 = vmatprep.subr.mxu0 0.0
        %666 = vmatpush1.msra.mxu0 0.0
        %667 = vmatprep.subr.mxu0 0.0
        %668 = vmatpush1.msra.mxu0 0.0
        %669 = vmatprep.subr.mxu0 0.0
        %670 = vmatpush1.msra.mxu0 0.0
        %671 = vmatprep.subr.mxu0 0.0
        %672 = vmatpush1.msra.mxu0 0.0
        %673 = vmatprep.subr.mxu0 0.0
        %674 = vmatpush1.msra.mxu0 0.0
        %675 = vmatprep.subr.mxu0 0.0
        %676 = vmatpush1.msra.mxu0 0.0
        %677 = vmatprep.subr.mxu0 0.0
        %678 = vmatpush1.msra.mxu0 0.0
        %679 = vmatprep.subr.mxu0 0.0
        %680 = vmatpush1.msra.mxu0 0.0
        %681 = vmatprep.subr.mxu0 0.0
        %682 = vmatpush1.msra.mxu0 0.0
        %683 = vmatprep.subr.mxu0 0.0
        %684 = vmatpush1.msra.mxu0 0.0
        %685 = vmatprep.subr.mxu0 0.0
        %686 = vmatpush1.msra.mxu0 0.0
        %687 = vmatprep.subr.mxu0 0.0
        %688 = vmatpush1.msra.mxu0 0.0
        %689 = vmatprep.subr.mxu0 0.0
        %690 = vmatpush1.msra.mxu0 0.0
        %691 = vmatprep.subr.mxu0 0.0
        %692 = vmatpush1.msra.mxu0 0.0
        %693 = vmatprep.subr.mxu0 0.0
        %694 = vmatpush1.msra.mxu0 0.0
        %695 = vmatprep.subr.mxu0 0.0
        %696 = vmatpush1.msra.mxu0 0.0
        %697 = vmatprep.subr.mxu0 0.0
        %698 = vmatpush1.msra.mxu0 0.0
        %699 = vmatprep.subr.mxu0 0.0
        %700 = vmatpush1.msra.mxu0 0.0
        %701 = vmatprep.subr.mxu0 0.0
        %702 = vmatpush1.msra.mxu0 0.0
        %703 = vmatprep.subr.mxu0 0.0
        %704 = vmatpush1.msra.mxu0 0.0
        %705 = vmatprep.subr.mxu0 0.0
        %706 = vmatpush1.msra.mxu0 0.0
        %707 = vmatprep.subr.mxu0 0.0
        %708 = vmatpush1.msra.mxu0 0.0
        %709 = vmatprep.subr.mxu0 0.0
        %710 = vmatpush1.msra.mxu0 0.0
        %711 = vmatprep.subr.mxu0 0.0
        %712 = vmatpush1.msra.mxu0 0.0
        %713 = vmatprep.subr.mxu0 0.0
        %714 = vmatpush1.msra.mxu0 0.0
        %715 = vmatprep.subr.mxu0 0.0
        %716 = vmatpush1.msra.mxu0 0.0
        %717 = vmatprep.subr.mxu0 0.0
        %718 = vmatpush1.msra.mxu0 0.0
        %719 = vmatprep.subr.mxu0 0.0
        %720 = vmatpush1.msra.mxu0 0.0
        %721 = vmatprep.mubr.f32.mxu0 0.0
        %722 = vmatmul.mubr.f32.gmra.mrb[0].mxu0 %v441
        %v723 = vpop.f32.mrb[0].mxu0
        %v724 = vadd.f32 %v302, %v723
        %v725 = vpop.f32.mrb[0].mxu0
        %v726 = vadd.f32 %v302, %v725
        %727 = vdwg.mxu0
        %v728 = vstv %s538
        %v729 = vmul.f32 %v728, %v724
        %v730 = vmul.f32 %v728, %v726
        %v733 = vcombine.low %v729, %v730
        %v735 = vsub.f32 %v536, %v733
        %v736 = vstv %s539
        %v737 = vmul.f32 %v735, %v736
        %v738 = vstv %s541
        %v739 = vmul.f32 %v738, %v737
        %v740 = vstv %s542
        %v741 = vmul.f32 %v740, %v523
        %v742 = vadd.f32 %v739, %v741
        %v743 = vstv %s543
        %v744 = vmul.f32 %v743, 0.0
        %v745 = vadd.f32 %v742, %v744
        %v746 = vstv %s544
        %v747 = vmul.f32 %v746, %v536
        %v748 = vstv %s540
        %v749 = vmul.f32 %v748, %v745
        %v750 = vadd.f32 %v747, %v749
        %s751 = sld [smem:[#allocation2 + $0x100]]
        %s752 = sld [smem:[#allocation2 + $0x101]]
        %s753 = sld [smem:[#allocation2 + $0x102]]
        %s754 = sld [smem:[#allocation2 + $0x103]]
        %s755 = sld [smem:[#allocation2 + $0x104]]
        %s756 = sld [smem:[#allocation2 + $0x105]]
        %s757 = sld [smem:[#allocation2 + $0x106]]
        %s758 = sld [smem:[#allocation2 + $0x107]]
        %v760 = vcombine.high %v750, %v750
        %v761 = vsel %vm328, %v750, 0
        %v763 = vsel %vm328, %v760, 0
        %765 = vmatprep.subr.mxu0 %v763
        %766 = vmatpush1.msra.mxu0 %v761
        %767 = vmatprep.subr.mxu0 0.0
        %768 = vmatpush1.msra.mxu0 0.0
        %769 = vmatprep.subr.mxu0 0.0
        %770 = vmatpush1.msra.mxu0 0.0
        %771 = vmatprep.subr.mxu0 0.0
        %772 = vmatpush1.msra.mxu0 0.0
        %773 = vmatprep.subr.mxu0 0.0
        %774 = vmatpush1.msra.mxu0 0.0
        %775 = vmatprep.subr.mxu0 0.0
        %776 = vmatpush1.msra.mxu0 0.0
        %777 = vmatprep.subr.mxu0 0.0
        %778 = vmatpush1.msra.mxu0 0.0
        %779 = vmatprep.subr.mxu0 0.0
        %780 = vmatpush1.msra.mxu0 0.0
        %781 = vmatprep.subr.mxu0 0.0
        %782 = vmatpush1.msra.mxu0 0.0
        %783 = vmatprep.subr.mxu0 0.0
        %784 = vmatpush1.msra.mxu0 0.0
        %785 = vmatprep.subr.mxu0 0.0
        %786 = vmatpush1.msra.mxu0 0.0
        %787 = vmatprep.subr.mxu0 0.0
        %788 = vmatpush1.msra.mxu0 0.0
        %789 = vmatprep.subr.mxu0 0.0
        %790 = vmatpush1.msra.mxu0 0.0
        %791 = vmatprep.subr.mxu0 0.0
        %792 = vmatpush1.msra.mxu0 0.0
        %793 = vmatprep.subr.mxu0 0.0
        %794 = vmatpush1.msra.mxu0 0.0
        %795 = vmatprep.subr.mxu0 0.0
        %796 = vmatpush1.msra.mxu0 0.0
        %797 = vmatprep.subr.mxu0 0.0
        %798 = vmatpush1.msra.mxu0 0.0
        %799 = vmatprep.subr.mxu0 0.0
        %800 = vmatpush1.msra.mxu0 0.0
        %801 = vmatprep.subr.mxu0 0.0
        %802 = vmatpush1.msra.mxu0 0.0
        %803 = vmatprep.subr.mxu0 0.0
        %804 = vmatpush1.msra.mxu0 0.0
        %805 = vmatprep.subr.mxu0 0.0
        %806 = vmatpush1.msra.mxu0 0.0
        %807 = vmatprep.subr.mxu0 0.0
        %808 = vmatpush1.msra.mxu0 0.0
        %809 = vmatprep.subr.mxu0 0.0
        %810 = vmatpush1.msra.mxu0 0.0
        %811 = vmatprep.subr.mxu0 0.0
        %812 = vmatpush1.msra.mxu0 0.0
        %813 = vmatprep.subr.mxu0 0.0
        %814 = vmatpush1.msra.mxu0 0.0
        %815 = vmatprep.subr.mxu0 0.0
        %816 = vmatpush1.msra.mxu0 0.0
        %817 = vmatprep.subr.mxu0 0.0
        %818 = vmatpush1.msra.mxu0 0.0
        %819 = vmatprep.subr.mxu0 0.0
        %820 = vmatpush1.msra.mxu0 0.0
        %821 = vmatprep.subr.mxu0 0.0
        %822 = vmatpush1.msra.mxu0 0.0
        %823 = vmatprep.subr.mxu0 0.0
        %824 = vmatpush1.msra.mxu0 0.0
        %825 = vmatprep.subr.mxu0 0.0
        %826 = vmatpush1.msra.mxu0 0.0
        %827 = vmatprep.subr.mxu0 0.0
        %828 = vmatpush1.msra.mxu0 0.0
        %829 = vmatprep.mubr.f32.mxu0 0.0
        %830 = vmatmul.mubr.f32.gmra.mrb[0].mxu0 %v317
        %v831 = vpop.f32.mrb[0].mxu0
        %v832 = vadd.f32 %v281, %v831
        %v833 = vpop.f32.mrb[0].mxu0
        %v834 = vadd.f32 %v281, %v833
        %835 = vmatprep.mubr.f32.mxu0 0.0
        %836 = vmatmul.mubr.f32.gmra.mrb[0].mxu0 %v320
        %v837 = vpop.f32.mrb[0].mxu0
        %v838 = vadd.f32 %v286, %v837
        %v839 = vpop.f32.mrb[0].mxu0
        %v840 = vadd.f32 %v286, %v839
        %841 = vmatprep.mubr.f32.mxu0 0.0
        %842 = vmatmul.mubr.f32.gmra.mrb[0].mxu0 %v323
        %v843 = vpop.f32.mrb[0].mxu0
        %v844 = vadd.f32 %v291, %v843
        %v845 = vpop.f32.mrb[0].mxu0
        %v846 = vadd.f32 %v291, %v845
        %847 = vmatprep.mubr.f32.mxu0 0.0
        %848 = vmatmul.mubr.f32.gmra.mrb[0].mxu0 %v326
        %v849 = vpop.f32.mrb[0].mxu0
        %v850 = vadd.f32 %v296, %v849
        %v851 = vpop.f32.mrb[0].mxu0
        %v852 = vadd.f32 %v296, %v851
        %853 = vdwg.mxu0
        %v854 = vstv %s751
        %v855 = vadd.f32 %v832, %v854
        %v856 = vadd.f32 %v834, %v854
        %v857 = vadd.f32 %v838, %v854
        %v858 = vadd.f32 %v840, %v854
        %v859 = vadd.f32 %v844, %v854
        %v860 = vadd.f32 %v846, %v854
        %v861 = vadd.f32 %v850, %v854
        %v862 = vadd.f32 %v852, %v854
        %v863 = vtanh.pop %v855
        %v864 = vtanh.pop %v856
        %v865 = vtanh.pop %v857
        %v866 = vtanh.pop %v858
        %v867 = vtanh.pop %v859
        %v868 = vtanh.pop %v860
        %v869 = vtanh.pop %v861
        %v870 = vtanh.pop %v862
        %871 = vmatprep.subr.mxu0 %v864
        %872 = vmatpush1.msra.mxu0 %v863
        %873 = vmatprep.subr.mxu0 %v866
        %874 = vmatpush1.msra.mxu0 %v865
        %875 = vmatprep.subr.mxu0 %v868
        %876 = vmatpush1.msra.mxu0 %v867
        %877 = vmatprep.subr.mxu0 %v870
        %878 = vmatpush1.msra.mxu0 %v869
        %879 = vmatprep.subr.mxu0 0.0
        %880 = vmatpush1.msra.mxu0 0.0
        %881 = vmatprep.subr.mxu0 0.0
        %882 = vmatpush1.msra.mxu0 0.0
        %883 = vmatprep.subr.mxu0 0.0
        %884 = vmatpush1.msra.mxu0 0.0
        %885 = vmatprep.subr.mxu0 0.0
        %886 = vmatpush1.msra.mxu0 0.0
        %887 = vmatprep.subr.mxu0 0.0
        %888 = vmatpush1.msra.mxu0 0.0
        %889 = vmatprep.subr.mxu0 0.0
        %890 = vmatpush1.msra.mxu0 0.0
        %891 = vmatprep.subr.mxu0 0.0
        %892 = vmatpush1.msra.mxu0 0.0
        %893 = vmatprep.subr.mxu0 0.0
        %894 = vmatpush1.msra.mxu0 0.0
        %895 = vmatprep.subr.mxu0 0.0
        %896 = vmatpush1.msra.mxu0 0.0
        %897 = vmatprep.subr.mxu0 0.0
        %898 = vmatpush1.msra.mxu0 0.0
        %899 = vmatprep.subr.mxu0 0.0
        %900 = vmatpush1.msra.mxu0 0.0
        %901 = vmatprep.subr.mxu0 0.0
        %902 = vmatpush1.msra.mxu0 0.0
        %903 = vmatprep.subr.mxu0 0.0
        %904 = vmatpush1.msra.mxu0 0.0
        %905 = vmatprep.subr.mxu0 0.0
        %906 = vmatpush1.msra.mxu0 0.0
        %907 = vmatprep.subr.mxu0 0.0
        %908 = vmatpush1.msra.mxu0 0.0
        %909 = vmatprep.subr.mxu0 0.0
        %910 = vmatpush1.msra.mxu0 0.0
        %911 = vmatprep.subr.mxu0 0.0
        %912 = vmatpush1.msra.mxu0 0.0
        %913 = vmatprep.subr.mxu0 0.0
        %914 = vmatpush1.msra.mxu0 0.0
        %915 = vmatprep.subr.mxu0 0.0
        %916 = vmatpush1.msra.mxu0 0.0
        %917 = vmatprep.subr.mxu0 0.0
        %918 = vmatpush1.msra.mxu0 0.0
        %919 = vmatprep.subr.mxu0 0.0
        %920 = vmatpush1.msra.mxu0 0.0
        %921 = vmatprep.subr.mxu0 0.0
        %922 = vmatpush1.msra.mxu0 0.0
        %923 = vmatprep.subr.mxu0 0.0
        %924 = vmatpush1.msra.mxu0 0.0
        %925 = vmatprep.subr.mxu0 0.0
        %926 = vmatpush1.msra.mxu0 0.0
        %927 = vmatprep.subr.mxu0 0.0
        %928 = vmatpush1.msra.mxu0 0.0
        %929 = vmatprep.subr.mxu0 0.0
        %930 = vmatpush1.msra.mxu0 0.0
        %931 = vmatprep.subr.mxu0 0.0
        %932 = vmatpush1.msra.mxu0 0.0
        %933 = vmatprep.subr.mxu0 0.0
        %934 = vmatpush1.msra.mxu0 0.0
        %935 = vmatprep.mubr.f32.mxu0 0.0
        %936 = vmatmul.mubr.f32.gmra.mrb[0].mxu0 %v441
        %v937 = vpop.f32.mrb[0].mxu0
        %v938 = vadd.f32 %v302, %v937
        %v939 = vpop.f32.mrb[0].mxu0
        %v940 = vadd.f32 %v302, %v939
        %941 = vdwg.mxu0
        %v942 = vstv %s752
        %v943 = vmul.f32 %v942, %v938
        %v944 = vmul.f32 %v942, %v940
        %v947 = vcombine.low %v943, %v944
        %v949 = vsub.f32 %v750, %v947
        %v950 = vstv %s753
        %v951 = vmul.f32 %v949, %v950
        %v952 = vstv %s755
        %v953 = vmul.f32 %v952, %v951
        %v954 = vstv %s756
        %v955 = vmul.f32 %v954, %v737
        %v956 = vadd.f32 %v953, %v955
        %v957 = vstv %s757
        %v958 = vmul.f32 %v957, %v523
        %v959 = vadd.f32 %v956, %v958
        %v960 = vstv %s758
        %v961 = vmul.f32 %v960, %v750
        %v962 = vstv %s754
        %v963 = vmul.f32 %v962, %v959
        %v964 = vadd.f32 %v961, %v963
        %s965 = sld [smem:[#allocation2 + $0x180]]
        %s966 = sld [smem:[#allocation2 + $0x181]]
        %s967 = sld [smem:[#allocation2 + $0x182]]
        %s968 = sld [smem:[#allocation2 + $0x183]]
        %s969 = sld [smem:[#allocation2 + $0x184]]
        %s970 = sld [smem:[#allocation2 + $0x185]]
        %s971 = sld [smem:[#allocation2 + $0x186]]
        %s972 = sld [smem:[#allocation2 + $0x187]]
        %v974 = vcombine.high %v964, %v964
        %v975 = vsel %vm328, %v964, 0
        %v977 = vsel %vm328, %v974, 0
        %979 = vmatprep.subr.mxu0 %v977
        %980 = vmatpush1.msra.mxu0 %v975
        %981 = vmatprep.subr.mxu0 0.0
        %982 = vmatpush1.msra.mxu0 0.0
        %983 = vmatprep.subr.mxu0 0.0
        %984 = vmatpush1.msra.mxu0 0.0
        %985 = vmatprep.subr.mxu0 0.0
        %986 = vmatpush1.msra.mxu0 0.0
        %987 = vmatprep.subr.mxu0 0.0
        %988 = vmatpush1.msra.mxu0 0.0
        %989 = vmatprep.subr.mxu0 0.0
        %990 = vmatpush1.msra.mxu0 0.0
        %991 = vmatprep.subr.mxu0 0.0
        %992 = vmatpush1.msra.mxu0 0.0
        %993 = vmatprep.subr.mxu0 0.0
        %994 = vmatpush1.msra.mxu0 0.0
        %995 = vmatprep.subr.mxu0 0.0
        %996 = vmatpush1.msra.mxu0 0.0
        %997 = vmatprep.subr.mxu0 0.0
        %998 = vmatpush1.msra.mxu0 0.0
        %999 = vmatprep.subr.mxu0 0.0
        %1000 = vmatpush1.msra.mxu0 0.0
        %1001 = vmatprep.subr.mxu0 0.0
        %1002 = vmatpush1.msra.mxu0 0.0
        %1003 = vmatprep.subr.mxu0 0.0
        %1004 = vmatpush1.msra.mxu0 0.0
        %1005 = vmatprep.subr.mxu0 0.0
        %1006 = vmatpush1.msra.mxu0 0.0
        %1007 = vmatprep.subr.mxu0 0.0
        %1008 = vmatpush1.msra.mxu0 0.0
        %1009 = vmatprep.subr.mxu0 0.0
        %1010 = vmatpush1.msra.mxu0 0.0
        %1011 = vmatprep.subr.mxu0 0.0
        %1012 = vmatpush1.msra.mxu0 0.0
        %1013 = vmatprep.subr.mxu0 0.0
        %1014 = vmatpush1.msra.mxu0 0.0
        %1015 = vmatprep.subr.mxu0 0.0
        %1016 = vmatpush1.msra.mxu0 0.0
        %1017 = vmatprep.subr.mxu0 0.0
        %1018 = vmatpush1.msra.mxu0 0.0
        %1019 = vmatprep.subr.mxu0 0.0
        %1020 = vmatpush1.msra.mxu0 0.0
        %1021 = vmatprep.subr.mxu0 0.0
        %1022 = vmatpush1.msra.mxu0 0.0
        %1023 = vmatprep.subr.mxu0 0.0
        %1024 = vmatpush1.msra.mxu0 0.0
        %1025 = vmatprep.subr.mxu0 0.0
        %1026 = vmatpush1.msra.mxu0 0.0
        %1027 = vmatprep.subr.mxu0 0.0
        %1028 = vmatpush1.msra.mxu0 0.0
        %1029 = vmatprep.subr.mxu0 0.0
        %1030 = vmatpush1.msra.mxu0 0.0
        %1031 = vmatprep.subr.mxu0 0.0
        %1032 = vmatpush1.msra.mxu0 0.0
        %1033 = vmatprep.subr.mxu0 0.0
        %1034 = vmatpush1.msra.mxu0 0.0
        %1035 = vmatprep.subr.mxu0 0.0
        %1036 = vmatpush1.msra.mxu0 0.0
        %1037 = vmatprep.subr.mxu0 0.0
        %1038 = vmatpush1.msra.mxu0 0.0
        %1039 = vmatprep.subr.mxu0 0.0
        %1040 = vmatpush1.msra.mxu0 0.0
        %1041 = vmatprep.subr.mxu0 0.0
        %1042 = vmatpush1.msra.mxu0 0.0
        %1043 = vmatprep.mubr.f32.mxu0 0.0
        %1044 = vmatmul.mubr.f32.gmra.mrb[0].mxu0 %v317
        %v1045 = vpop.f32.mrb[0].mxu0
        %v1046 = vadd.f32 %v281, %v1045
        %v1047 = vpop.f32.mrb[0].mxu0
        %v1048 = vadd.f32 %v281, %v1047
        %1049 = vmatprep.mubr.f32.mxu0 0.0
        %1050 = vmatmul.mubr.f32.gmra.mrb[0].mxu0 %v320
        %v1051 = vpop.f32.mrb[0].mxu0
        %v1052 = vadd.f32 %v286, %v1051
        %v1053 = vpop.f32.mrb[0].mxu0
        %v1054 = vadd.f32 %v286, %v1053
        %1055 = vmatprep.mubr.f32.mxu0 0.0
        %1056 = vmatmul.mubr.f32.gmra.mrb[0].mxu0 %v323
        %v1057 = vpop.f32.mrb[0].mxu0
        %v1058 = vadd.f32 %v291, %v1057
        %v1059 = vpop.f32.mrb[0].mxu0
        %v1060 = vadd.f32 %v291, %v1059
        %1061 = vmatprep.mubr.f32.mxu0 0.0
        %1062 = vmatmul.mubr.f32.gmra.mrb[0].mxu0 %v326
        %v1063 = vpop.f32.mrb[0].mxu0
        %v1064 = vadd.f32 %v296, %v1063
        %v1065 = vpop.f32.mrb[0].mxu0
        %v1066 = vadd.f32 %v296, %v1065
        %1067 = vdwg.mxu0
        %v1068 = vstv %s965
        %v1069 = vadd.f32 %v1046, %v1068
        %v1070 = vadd.f32 %v1048, %v1068
        %v1071 = vadd.f32 %v1052, %v1068
        %v1072 = vadd.f32 %v1054, %v1068
        %v1073 = vadd.f32 %v1058, %v1068
        %v1074 = vadd.f32 %v1060, %v1068
        %v1075 = vadd.f32 %v1064, %v1068
        %v1076 = vadd.f32 %v1066, %v1068
        %v1077 = vtanh.pop %v1069
        %v1078 = vtanh.pop %v1070
        %v1079 = vtanh.pop %v1071
        %v1080 = vtanh.pop %v1072
        %v1081 = vtanh.pop %v1073
        %v1082 = vtanh.pop %v1074
        %v1083 = vtanh.pop %v1075
        %v1084 = vtanh.pop %v1076
        %1085 = vmatprep.subr.mxu0 %v1078
        %1086 = vmatpush1.msra.mxu0 %v1077
        %1087 = vmatprep.subr.mxu0 %v1080
        %1088 = vmatpush1.msra.mxu0 %v1079
        %1089 = vmatprep.subr.mxu0 %v1082
        %1090 = vmatpush1.msra.mxu0 %v1081
        %1091 = vmatprep.subr.mxu0 %v1084
        %1092 = vmatpush1.msra.mxu0 %v1083
        %1093 = vmatprep.subr.mxu0 0.0
        %1094 = vmatpush1.msra.mxu0 0.0
        %1095 = vmatprep.subr.mxu0 0.0
        %1096 = vmatpush1.msra.mxu0 0.0
        %1097 = vmatprep.subr.mxu0 0.0
        %1098 = vmatpush1.msra.mxu0 0.0
        %1099 = vmatprep.subr.mxu0 0.0
        %1100 = vmatpush1.msra.mxu0 0.0
        %1101 = vmatprep.subr.mxu0 0.0
        %1102 = vmatpush1.msra.mxu0 0.0
        %1103 = vmatprep.subr.mxu0 0.0
        %1104 = vmatpush1.msra.mxu0 0.0
        %1105 = vmatprep.subr.mxu0 0.0
        %1106 = vmatpush1.msra.mxu0 0.0
        %1107 = vmatprep.subr.mxu0 0.0
        %1108 = vmatpush1.msra.mxu0 0.0
        %1109 = vmatprep.subr.mxu0 0.0
        %1110 = vmatpush1.msra.mxu0 0.0
        %1111 = vmatprep.subr.mxu0 0.0
        %1112 = vmatpush1.msra.mxu0 0.0
        %1113 = vmatprep.subr.mxu0 0.0
        %1114 = vmatpush1.msra.mxu0 0.0
        %1115 = vmatprep.subr.mxu0 0.0
        %1116 = vmatpush1.msra.mxu0 0.0
        %1117 = vmatprep.subr.mxu0 0.0
        %1118 = vmatpush1.msra.mxu0 0.0
        %1119 = vmatprep.subr.mxu0 0.0
        %1120 = vmatpush1.msra.mxu0 0.0
        %1121 = vmatprep.subr.mxu0 0.0
        %1122 = vmatpush1.msra.mxu0 0.0
        %1123 = vmatprep.subr.mxu0 0.0
        %1124 = vmatpush1.msra.mxu0 0.0
        %1125 = vmatprep.subr.mxu0 0.0
        %1126 = vmatpush1.msra.mxu0 0.0
        %1127 = vmatprep.subr.mxu0 0.0
        %1128 = vmatpush1.msra.mxu0 0.0
        %1129 = vmatprep.subr.mxu0 0.0
        %1130 = vmatpush1.msra.mxu0 0.0
        %1131 = vmatprep.subr.mxu0 0.0
        %1132 = vmatpush1.msra.mxu0 0.0
        %1133 = vmatprep.subr.mxu0 0.0
        %1134 = vmatpush1.msra.mxu0 0.0
        %1135 = vmatprep.subr.mxu0 0.0
        %1136 = vmatpush1.msra.mxu0 0.0
        %1137 = vmatprep.subr.mxu0 0.0
        %1138 = vmatpush1.msra.mxu0 0.0
        %1139 = vmatprep.subr.mxu0 0.0
        %1140 = vmatpush1.msra.mxu0 0.0
        %1141 = vmatprep.subr.mxu0 0.0
        %1142 = vmatpush1.msra.mxu0 0.0
        %1143 = vmatprep.subr.mxu0 0.0
        %1144 = vmatpush1.msra.mxu0 0.0
        %1145 = vmatprep.subr.mxu0 0.0
        %1146 = vmatpush1.msra.mxu0 0.0
        %1147 = vmatprep.subr.mxu0 0.0
        %1148 = vmatpush1.msra.mxu0 0.0
        %1149 = vmatprep.mubr.f32.mxu0 0.0
        %1150 = vmatmul.mubr.f32.gmra.mrb[0].mxu0 %v441
        %v1151 = vpop.f32.mrb[0].mxu0
        %v1152 = vadd.f32 %v302, %v1151
        %v1153 = vpop.f32.mrb[0].mxu0
        %v1154 = vadd.f32 %v302, %v1153
        %1155 = vdwg.mxu0
        %v1156 = vstv %s966
        %v1157 = vmul.f32 %v1156, %v1152
        %v1158 = vmul.f32 %v1156, %v1154
        %v1161 = vcombine.low %v1157, %v1158
        %v1163 = vsub.f32 %v964, %v1161
        %v1164 = vstv %s967
        %v1165 = vmul.f32 %v1163, %v1164
        %v1166 = vstv %s969
        %v1167 = vmul.f32 %v1166, %v1165
        %v1168 = vstv %s970
        %v1169 = vmul.f32 %v1168, %v951
        %v1170 = vadd.f32 %v1167, %v1169
        %v1171 = vstv %s971
        %v1172 = vmul.f32 %v1171, %v737
        %v1173 = vadd.f32 %v1170, %v1172
        %v1174 = vstv %s972
        %v1175 = vmul.f32 %v1174, %v964
        %v1176 = vstv %s968
        %v1177 = vmul.f32 %v1176, %v1173
        %v1178 = vadd.f32 %v1175, %v1177
        %s1179 = sld [smem:[#allocation2 + $0x200]]
        %s1180 = sld [smem:[#allocation2 + $0x201]]
        %s1181 = sld [smem:[#allocation2 + $0x202]]
        %s1182 = sld [smem:[#allocation2 + $0x203]]
        %s1183 = sld [smem:[#allocation2 + $0x204]]
        %s1184 = sld [smem:[#allocation2 + $0x205]]
        %s1185 = sld [smem:[#allocation2 + $0x206]]
        %s1186 = sld [smem:[#allocation2 + $0x207]]
        %v1188 = vcombine.high %v1178, %v1178
        %v1189 = vsel %vm328, %v1178, 0
        %v1191 = vsel %vm328, %v1188, 0
        %1193 = vmatprep.subr.mxu0 %v1191
        %1194 = vmatpush1.msra.mxu0 %v1189
        %1195 = vmatprep.subr.mxu0 0.0
        %1196 = vmatpush1.msra.mxu0 0.0
        %1197 = vmatprep.subr.mxu0 0.0
        %1198 = vmatpush1.msra.mxu0 0.0
        %1199 = vmatprep.subr.mxu0 0.0
        %1200 = vmatpush1.msra.mxu0 0.0
        %1201 = vmatprep.subr.mxu0 0.0
        %1202 = vmatpush1.msra.mxu0 0.0
        %1203 = vmatprep.subr.mxu0 0.0
        %1204 = vmatpush1.msra.mxu0 0.0
        %1205 = vmatprep.subr.mxu0 0.0
        %1206 = vmatpush1.msra.mxu0 0.0
        %1207 = vmatprep.subr.mxu0 0.0
        %1208 = vmatpush1.msra.mxu0 0.0
        %1209 = vmatprep.subr.mxu0 0.0
        %1210 = vmatpush1.msra.mxu0 0.0
        %1211 = vmatprep.subr.mxu0 0.0
        %1212 = vmatpush1.msra.mxu0 0.0
        %1213 = vmatprep.subr.mxu0 0.0
        %1214 = vmatpush1.msra.mxu0 0.0
        %1215 = vmatprep.subr.mxu0 0.0
        %1216 = vmatpush1.msra.mxu0 0.0
        %1217 = vmatprep.subr.mxu0 0.0
        %1218 = vmatpush1.msra.mxu0 0.0
        %1219 = vmatprep.subr.mxu0 0.0
        %1220 = vmatpush1.msra.mxu0 0.0
        %1221 = vmatprep.subr.mxu0 0.0
        %1222 = vmatpush1.msra.mxu0 0.0
        %1223 = vmatprep.subr.mxu0 0.0
        %1224 = vmatpush1.msra.mxu0 0.0
        %1225 = vmatprep.subr.mxu0 0.0
        %1226 = vmatpush1.msra.mxu0 0.0
        %1227 = vmatprep.subr.mxu0 0.0
        %1228 = vmatpush1.msra.mxu0 0.0
        %1229 = vmatprep.subr.mxu0 0.0
        %1230 = vmatpush1.msra.mxu0 0.0
        %1231 = vmatprep.subr.mxu0 0.0
        %1232 = vmatpush1.msra.mxu0 0.0
        %1233 = vmatprep.subr.mxu0 0.0
        %1234 = vmatpush1.msra.mxu0 0.0
        %1235 = vmatprep.subr.mxu0 0.0
        %1236 = vmatpush1.msra.mxu0 0.0
        %1237 = vmatprep.subr.mxu0 0.0
        %1238 = vmatpush1.msra.mxu0 0.0
        %1239 = vmatprep.subr.mxu0 0.0
        %1240 = vmatpush1.msra.mxu0 0.0
        %1241 = vmatprep.subr.mxu0 0.0
        %1242 = vmatpush1.msra.mxu0 0.0
        %1243 = vmatprep.subr.mxu0 0.0
        %1244 = vmatpush1.msra.mxu0 0.0
        %1245 = vmatprep.subr.mxu0 0.0
        %1246 = vmatpush1.msra.mxu0 0.0
        %1247 = vmatprep.subr.mxu0 0.0
        %1248 = vmatpush1.msra.mxu0 0.0
        %1249 = vmatprep.subr.mxu0 0.0
        %1250 = vmatpush1.msra.mxu0 0.0
        %1251 = vmatprep.subr.mxu0 0.0
        %1252 = vmatpush1.msra.mxu0 0.0
        %1253 = vmatprep.subr.mxu0 0.0
        %1254 = vmatpush1.msra.mxu0 0.0
        %1255 = vmatprep.subr.mxu0 0.0
        %1256 = vmatpush1.msra.mxu0 0.0
        %1257 = vmatprep.mubr.f32.mxu0 0.0
        %1258 = vmatmul.mubr.f32.gmra.mrb[0].mxu0 %v317
        %v1259 = vpop.f32.mrb[0].mxu0
        %v1260 = vadd.f32 %v281, %v1259
        %v1261 = vpop.f32.mrb[0].mxu0
        %v1262 = vadd.f32 %v281, %v1261
        %1263 = vmatprep.mubr.f32.mxu0 0.0
        %1264 = vmatmul.mubr.f32.gmra.mrb[0].mxu0 %v320
        %v1265 = vpop.f32.mrb[0].mxu0
        %v1266 = vadd.f32 %v286, %v1265
        %v1267 = vpop.f32.mrb[0].mxu0
        %v1268 = vadd.f32 %v286, %v1267
        %1269 = vmatprep.mubr.f32.mxu0 0.0
        %1270 = vmatmul.mubr.f32.gmra.mrb[0].mxu0 %v323
        %v1271 = vpop.f32.mrb[0].mxu0
        %v1272 = vadd.f32 %v291, %v1271
        %v1273 = vpop.f32.mrb[0].mxu0
        %v1274 = vadd.f32 %v291, %v1273
        %1275 = vmatprep.mubr.f32.mxu0 0.0
        %1276 = vmatmul.mubr.f32.gmra.mrb[0].mxu0 %v326
        %v1277 = vpop.f32.mrb[0].mxu0
        %v1278 = vadd.f32 %v296, %v1277
        %v1279 = vpop.f32.mrb[0].mxu0
        %v1280 = vadd.f32 %v296, %v1279
        %1281 = vdwg.mxu0
        %v1282 = vstv %s1179
        %v1283 = vadd.f32 %v1260, %v1282
        %v1284 = vadd.f32 %v1262, %v1282
        %v1285 = vadd.f32 %v1266, %v1282
        %v1286 = vadd.f32 %v1268, %v1282
        %v1287 = vadd.f32 %v1272, %v1282
        %v1288 = vadd.f32 %v1274, %v1282
        %v1289 = vadd.f32 %v1278, %v1282
        %v1290 = vadd.f32 %v1280, %v1282
        %v1291 = vtanh.pop %v1283
        %v1292 = vtanh.pop %v1284
        %v1293 = vtanh.pop %v1285
        %v1294 = vtanh.pop %v1286
        %v1295 = vtanh.pop %v1287
        %v1296 = vtanh.pop %v1288
        %v1297 = vtanh.pop %v1289
        %v1298 = vtanh.pop %v1290
        %1299 = vmatprep.subr.mxu0 %v1292
        %1300 = vmatpush1.msra.mxu0 %v1291
        %1301 = vmatprep.subr.mxu0 %v1294
        %1302 = vmatpush1.msra.mxu0 %v1293
        %1303 = vmatprep.subr.mxu0 %v1296
        %1304 = vmatpush1.msra.mxu0 %v1295
        %1305 = vmatprep.subr.mxu0 %v1298
        %1306 = vmatpush1.msra.mxu0 %v1297
        %1307 = vmatprep.subr.mxu0 0.0
        %1308 = vmatpush1.msra.mxu0 0.0
        %1309 = vmatprep.subr.mxu0 0.0
        %1310 = vmatpush1.msra.mxu0 0.0
        %1311 = vmatprep.subr.mxu0 0.0
        %1312 = vmatpush1.msra.mxu0 0.0
        %1313 = vmatprep.subr.mxu0 0.0
        %1314 = vmatpush1.msra.mxu0 0.0
        %1315 = vmatprep.subr.mxu0 0.0
        %1316 = vmatpush1.msra.mxu0 0.0
        %1317 = vmatprep.subr.mxu0 0.0
        %1318 = vmatpush1.msra.mxu0 0.0
        %1319 = vmatprep.subr.mxu0 0.0
        %1320 = vmatpush1.msra.mxu0 0.0
        %1321 = vmatprep.subr.mxu0 0.0
        %1322 = vmatpush1.msra.mxu0 0.0
        %1323 = vmatprep.subr.mxu0 0.0
        %1324 = vmatpush1.msra.mxu0 0.0
        %1325 = vmatprep.subr.mxu0 0.0
        %1326 = vmatpush1.msra.mxu0 0.0
        %1327 = vmatprep.subr.mxu0 0.0
        %1328 = vmatpush1.msra.mxu0 0.0
        %1329 = vmatprep.subr.mxu0 0.0
        %1330 = vmatpush1.msra.mxu0 0.0
        %1331 = vmatprep.subr.mxu0 0.0
        %1332 = vmatpush1.msra.mxu0 0.0
        %1333 = vmatprep.subr.mxu0 0.0
        %1334 = vmatpush1.msra.mxu0 0.0
        %1335 = vmatprep.subr.mxu0 0.0
        %1336 = vmatpush1.msra.mxu0 0.0
        %1337 = vmatprep.subr.mxu0 0.0
        %1338 = vmatpush1.msra.mxu0 0.0
        %1339 = vmatprep.subr.mxu0 0.0
        %1340 = vmatpush1.msra.mxu0 0.0
        %1341 = vmatprep.subr.mxu0 0.0
        %1342 = vmatpush1.msra.mxu0 0.0
        %1343 = vmatprep.subr.mxu0 0.0
        %1344 = vmatpush1.msra.mxu0 0.0
        %1345 = vmatprep.subr.mxu0 0.0
        %1346 = vmatpush1.msra.mxu0 0.0
        %1347 = vmatprep.subr.mxu0 0.0
        %1348 = vmatpush1.msra.mxu0 0.0
        %1349 = vmatprep.subr.mxu0 0.0
        %1350 = vmatpush1.msra.mxu0 0.0
        %1351 = vmatprep.subr.mxu0 0.0
        %1352 = vmatpush1.msra.mxu0 0.0
        %1353 = vmatprep.subr.mxu0 0.0
        %1354 = vmatpush1.msra.mxu0 0.0
        %1355 = vmatprep.subr.mxu0 0.0
        %1356 = vmatpush1.msra.mxu0 0.0
        %1357 = vmatprep.subr.mxu0 0.0
        %1358 = vmatpush1.msra.mxu0 0.0
        %1359 = vmatprep.subr.mxu0 0.0
        %1360 = vmatpush1.msra.mxu0 0.0
        %1361 = vmatprep.subr.mxu0 0.0
        %1362 = vmatpush1.msra.mxu0 0.0
        %1363 = vmatprep.mubr.f32.mxu0 0.0
        %1364 = vmatmul.mubr.f32.gmra.mrb[0].mxu0 %v441
        %v1365 = vpop.f32.mrb[0].mxu0
        %v1366 = vadd.f32 %v302, %v1365
        %v1367 = vpop.f32.mrb[0].mxu0
        %v1368 = vadd.f32 %v302, %v1367
        %1369 = vdwg.mxu0
        %v1370 = vstv %s1180
        %v1371 = vmul.f32 %v1370, %v1366
        %v1372 = vmul.f32 %v1370, %v1368
        %v1375 = vcombine.low %v1371, %v1372
        %v1377 = vsub.f32 %v1178, %v1375
        %v1378 = vstv %s1181
        %v1379 = vmul.f32 %v1377, %v1378
        %v1380 = vstv %s1183
        %v1381 = vmul.f32 %v1380, %v1379
        %v1382 = vstv %s1184
        %v1383 = vmul.f32 %v1382, %v1165
        %v1384 = vadd.f32 %v1381, %v1383
        %v1385 = vstv %s1185
        %v1386 = vmul.f32 %v1385, %v951
        %v1387 = vadd.f32 %v1384, %v1386
        %v1388 = vstv %s1186
        %v1389 = vmul.f32 %v1388, %v1178
        %v1390 = vstv %s1182
        %v1391 = vmul.f32 %v1390, %v1387
        %v1392 = vadd.f32 %v1389, %v1391
        %s1393 = sld [smem:[#allocation2 + $0x280]]
        %s1394 = sld [smem:[#allocation2 + $0x281]]
        %s1395 = sld [smem:[#allocation2 + $0x282]]
        %s1396 = sld [smem:[#allocation2 + $0x283]]
        %s1397 = sld [smem:[#allocation2 + $0x284]]
        %s1398 = sld [smem:[#allocation2 + $0x285]]
        %s1399 = sld [smem:[#allocation2 + $0x286]]
        %s1400 = sld [smem:[#allocation2 + $0x287]]
        %v1402 = vcombine.high %v1392, %v1392
        %v1403 = vsel %vm328, %v1392, 0
        %v1405 = vsel %vm328, %v1402, 0
        %1407 = vmatprep.subr.mxu0 %v1405
        %1408 = vmatpush1.msra.mxu0 %v1403
        %1409 = vmatprep.subr.mxu0 0.0
        %1410 = vmatpush1.msra.mxu0 0.0
        %1411 = vmatprep.subr.mxu0 0.0
        %1412 = vmatpush1.msra.mxu0 0.0
        %1413 = vmatprep.subr.mxu0 0.0
        %1414 = vmatpush1.msra.mxu0 0.0
        %1415 = vmatprep.subr.mxu0 0.0
        %1416 = vmatpush1.msra.mxu0 0.0
        %1417 = vmatprep.subr.mxu0 0.0
        %1418 = vmatpush1.msra.mxu0 0.0
        %1419 = vmatprep.subr.mxu0 0.0
        %1420 = vmatpush1.msra.mxu0 0.0
        %1421 = vmatprep.subr.mxu0 0.0
        %1422 = vmatpush1.msra.mxu0 0.0
        %1423 = vmatprep.subr.mxu0 0.0
        %1424 = vmatpush1.msra.mxu0 0.0
        %1425 = vmatprep.subr.mxu0 0.0
        %1426 = vmatpush1.msra.mxu0 0.0
        %1427 = vmatprep.subr.mxu0 0.0
        %1428 = vmatpush1.msra.mxu0 0.0
        %1429 = vmatprep.subr.mxu0 0.0
        %1430 = vmatpush1.msra.mxu0 0.0
        %1431 = vmatprep.subr.mxu0 0.0
        %1432 = vmatpush1.msra.mxu0 0.0
        %1433 = vmatprep.subr.mxu0 0.0
        %1434 = vmatpush1.msra.mxu0 0.0
        %1435 = vmatprep.subr.mxu0 0.0
        %1436 = vmatpush1.msra.mxu0 0.0
        %1437 = vmatprep.subr.mxu0 0.0
        %1438 = vmatpush1.msra.mxu0 0.0
        %1439 = vmatprep.subr.mxu0 0.0
        %1440 = vmatpush1.msra.mxu0 0.0
        %1441 = vmatprep.subr.mxu0 0.0
        %1442 = vmatpush1.msra.mxu0 0.0
        %1443 = vmatprep.subr.mxu0 0.0
        %1444 = vmatpush1.msra.mxu0 0.0
        %1445 = vmatprep.subr.mxu0 0.0
        %1446 = vmatpush1.msra.mxu0 0.0
        %1447 = vmatprep.subr.mxu0 0.0
        %1448 = vmatpush1.msra.mxu0 0.0
        %1449 = vmatprep.subr.mxu0 0.0
        %1450 = vmatpush1.msra.mxu0 0.0
        %1451 = vmatprep.subr.mxu0 0.0
        %1452 = vmatpush1.msra.mxu0 0.0
        %1453 = vmatprep.subr.mxu0 0.0
        %1454 = vmatpush1.msra.mxu0 0.0
        %1455 = vmatprep.subr.mxu0 0.0
        %1456 = vmatpush1.msra.mxu0 0.0
        %1457 = vmatprep.subr.mxu0 0.0
        %1458 = vmatpush1.msra.mxu0 0.0
        %1459 = vmatprep.subr.mxu0 0.0
        %1460 = vmatpush1.msra.mxu0 0.0
        %1461 = vmatprep.subr.mxu0 0.0
        %1462 = vmatpush1.msra.mxu0 0.0
        %1463 = vmatprep.subr.mxu0 0.0
        %1464 = vmatpush1.msra.mxu0 0.0
        %1465 = vmatprep.subr.mxu0 0.0
        %1466 = vmatpush1.msra.mxu0 0.0
        %1467 = vmatprep.subr.mxu0 0.0
        %1468 = vmatpush1.msra.mxu0 0.0
        %1469 = vmatprep.subr.mxu0 0.0
        %1470 = vmatpush1.msra.mxu0 0.0
        %1471 = vmatprep.mubr.f32.mxu0 0.0
        %1472 = vmatmul.mubr.f32.gmra.mrb[0].mxu0 %v317
        %v1473 = vpop.f32.mrb[0].mxu0
        %v1474 = vadd.f32 %v281, %v1473
        %v1475 = vpop.f32.mrb[0].mxu0
        %v1476 = vadd.f32 %v281, %v1475
        %1477 = vmatprep.mubr.f32.mxu0 0.0
        %1478 = vmatmul.mubr.f32.gmra.mrb[0].mxu0 %v320
        %v1479 = vpop.f32.mrb[0].mxu0
        %v1480 = vadd.f32 %v286, %v1479
        %v1481 = vpop.f32.mrb[0].mxu0
        %v1482 = vadd.f32 %v286, %v1481
        %1483 = vmatprep.mubr.f32.mxu0 0.0
        %1484 = vmatmul.mubr.f32.gmra.mrb[0].mxu0 %v323
        %v1485 = vpop.f32.mrb[0].mxu0
        %v1486 = vadd.f32 %v291, %v1485
        %v1487 = vpop.f32.mrb[0].mxu0
        %v1488 = vadd.f32 %v291, %v1487
        %1489 = vmatprep.mubr.f32.mxu0 0.0
        %1490 = vmatmul.mubr.f32.gmra.mrb[0].mxu0 %v326
        %v1491 = vpop.f32.mrb[0].mxu0
        %v1492 = vadd.f32 %v296, %v1491
        %v1493 = vpop.f32.mrb[0].mxu0
        %v1494 = vadd.f32 %v296, %v1493
        %1495 = vdwg.mxu0
        %v1496 = vstv %s1393
        %v1497 = vadd.f32 %v1474, %v1496
        %v1498 = vadd.f32 %v1476, %v1496
        %v1499 = vadd.f32 %v1480, %v1496
        %v1500 = vadd.f32 %v1482, %v1496
        %v1501 = vadd.f32 %v1486, %v1496
        %v1502 = vadd.f32 %v1488, %v1496
        %v1503 = vadd.f32 %v1492, %v1496
        %v1504 = vadd.f32 %v1494, %v1496
        %v1505 = vtanh.pop %v1497
        %v1506 = vtanh.pop %v1498
        %v1507 = vtanh.pop %v1499
        %v1508 = vtanh.pop %v1500
        %v1509 = vtanh.pop %v1501
        %v1510 = vtanh.pop %v1502
        %v1511 = vtanh.pop %v1503
        %v1512 = vtanh.pop %v1504
        %1513 = vmatprep.subr.mxu0 %v1506
        %1514 = vmatpush1.msra.mxu0 %v1505
        %1515 = vmatprep.subr.mxu0 %v1508
        %1516 = vmatpush1.msra.mxu0 %v1507
        %1517 = vmatprep.subr.mxu0 %v1510
        %1518 = vmatpush1.msra.mxu0 %v1509
        %1519 = vmatprep.subr.mxu0 %v1512
        %1520 = vmatpush1.msra.mxu0 %v1511
        %1521 = vmatprep.subr.mxu0 0.0
        %1522 = vmatpush1.msra.mxu0 0.0
        %1523 = vmatprep.subr.mxu0 0.0
        %1524 = vmatpush1.msra.mxu0 0.0
        %1525 = vmatprep.subr.mxu0 0.0
        %1526 = vmatpush1.msra.mxu0 0.0
        %1527 = vmatprep.subr.mxu0 0.0
        %1528 = vmatpush1.msra.mxu0 0.0
        %1529 = vmatprep.subr.mxu0 0.0
        %1530 = vmatpush1.msra.mxu0 0.0
        %1531 = vmatprep.subr.mxu0 0.0
        %1532 = vmatpush1.msra.mxu0 0.0
        %1533 = vmatprep.subr.mxu0 0.0
        %1534 = vmatpush1.msra.mxu0 0.0
        %1535 = vmatprep.subr.mxu0 0.0
        %1536 = vmatpush1.msra.mxu0 0.0
        %1537 = vmatprep.subr.mxu0 0.0
        %1538 = vmatpush1.msra.mxu0 0.0
        %1539 = vmatprep.subr.mxu0 0.0
        %1540 = vmatpush1.msra.mxu0 0.0
        %1541 = vmatprep.subr.mxu0 0.0
        %1542 = vmatpush1.msra.mxu0 0.0
        %1543 = vmatprep.subr.mxu0 0.0
        %1544 = vmatpush1.msra.mxu0 0.0
        %1545 = vmatprep.subr.mxu0 0.0
        %1546 = vmatpush1.msra.mxu0 0.0
        %1547 = vmatprep.subr.mxu0 0.0
        %1548 = vmatpush1.msra.mxu0 0.0
        %1549 = vmatprep.subr.mxu0 0.0
        %1550 = vmatpush1.msra.mxu0 0.0
        %1551 = vmatprep.subr.mxu0 0.0
        %1552 = vmatpush1.msra.mxu0 0.0
        %1553 = vmatprep.subr.mxu0 0.0
        %1554 = vmatpush1.msra.mxu0 0.0
        %1555 = vmatprep.subr.mxu0 0.0
        %1556 = vmatpush1.msra.mxu0 0.0
        %1557 = vmatprep.subr.mxu0 0.0
        %1558 = vmatpush1.msra.mxu0 0.0
        %1559 = vmatprep.subr.mxu0 0.0
        %1560 = vmatpush1.msra.mxu0 0.0
        %1561 = vmatprep.subr.mxu0 0.0
        %1562 = vmatpush1.msra.mxu0 0.0
        %1563 = vmatprep.subr.mxu0 0.0
        %1564 = vmatpush1.msra.mxu0 0.0
        %1565 = vmatprep.subr.mxu0 0.0
        %1566 = vmatpush1.msra.mxu0 0.0
        %1567 = vmatprep.subr.mxu0 0.0
        %1568 = vmatpush1.msra.mxu0 0.0
        %1569 = vmatprep.subr.mxu0 0.0
        %1570 = vmatpush1.msra.mxu0 0.0
        %1571 = vmatprep.subr.mxu0 0.0
        %1572 = vmatpush1.msra.mxu0 0.0
        %1573 = vmatprep.subr.mxu0 0.0
        %1574 = vmatpush1.msra.mxu0 0.0
        %1575 = vmatprep.subr.mxu0 0.0
        %1576 = vmatpush1.msra.mxu0 0.0
        %1577 = vmatprep.mubr.f32.mxu0 0.0
        %1578 = vmatmul.mubr.f32.gmra.mrb[0].mxu0 %v441
        %v1579 = vpop.f32.mrb[0].mxu0
        %v1580 = vadd.f32 %v302, %v1579
        %v1581 = vpop.f32.mrb[0].mxu0
        %v1582 = vadd.f32 %v302, %v1581
        %1583 = vdwg.mxu0
        %v1584 = vstv %s1394
        %v1585 = vmul.f32 %v1584, %v1580
        %v1586 = vmul.f32 %v1584, %v1582
        %v1589 = vcombine.low %v1585, %v1586
        %v1591 = vsub.f32 %v1392, %v1589
        %v1592 = vstv %s1395
        %v1593 = vmul.f32 %v1591, %v1592
        %v1594 = vstv %s1397
        %v1595 = vmul.f32 %v1594, %v1593
        %v1596 = vstv %s1398
        %v1597 = vmul.f32 %v1596, %v1379
        %v1598 = vadd.f32 %v1595, %v1597
        %v1599 = vstv %s1399
        %v1600 = vmul.f32 %v1599, %v1165
        %v1601 = vadd.f32 %v1598, %v1600
        %v1602 = vstv %s1400
        %v1603 = vmul.f32 %v1602, %v1392
        %v1604 = vstv %s1396
        %v1605 = vmul.f32 %v1604, %v1601
        %v1606 = vadd.f32 %v1603, %v1605
        %s1607 = sld [smem:[#allocation2 + $0x300]]
        %s1608 = sld [smem:[#allocation2 + $0x301]]
        %s1609 = sld [smem:[#allocation2 + $0x302]]
        %s1610 = sld [smem:[#allocation2 + $0x303]]
        %s1611 = sld [smem:[#allocation2 + $0x304]]
        %s1612 = sld [smem:[#allocation2 + $0x305]]
        %s1613 = sld [smem:[#allocation2 + $0x306]]
        %s1614 = sld [smem:[#allocation2 + $0x307]]
        %v1616 = vcombine.high %v1606, %v1606
        %v1617 = vsel %vm328, %v1606, 0
        %v1619 = vsel %vm328, %v1616, 0
        %1621 = vmatprep.subr.mxu0 %v1619
        %1622 = vmatpush1.msra.mxu0 %v1617
        %1623 = vmatprep.subr.mxu0 0.0
        %1624 = vmatpush1.msra.mxu0 0.0
        %1625 = vmatprep.subr.mxu0 0.0
        %1626 = vmatpush1.msra.mxu0 0.0
        %1627 = vmatprep.subr.mxu0 0.0
        %1628 = vmatpush1.msra.mxu0 0.0
        %1629 = vmatprep.subr.mxu0 0.0
        %1630 = vmatpush1.msra.mxu0 0.0
        %1631 = vmatprep.subr.mxu0 0.0
        %1632 = vmatpush1.msra.mxu0 0.0
        %1633 = vmatprep.subr.mxu0 0.0
        %1634 = vmatpush1.msra.mxu0 0.0
        %1635 = vmatprep.subr.mxu0 0.0
        %1636 = vmatpush1.msra.mxu0 0.0
        %1637 = vmatprep.subr.mxu0 0.0
        %1638 = vmatpush1.msra.mxu0 0.0
        %1639 = vmatprep.subr.mxu0 0.0
        %1640 = vmatpush1.msra.mxu0 0.0
        %1641 = vmatprep.subr.mxu0 0.0
        %1642 = vmatpush1.msra.mxu0 0.0
        %1643 = vmatprep.subr.mxu0 0.0
        %1644 = vmatpush1.msra.mxu0 0.0
        %1645 = vmatprep.subr.mxu0 0.0
        %1646 = vmatpush1.msra.mxu0 0.0
        %1647 = vmatprep.subr.mxu0 0.0
        %1648 = vmatpush1.msra.mxu0 0.0
        %1649 = vmatprep.subr.mxu0 0.0
        %1650 = vmatpush1.msra.mxu0 0.0
        %1651 = vmatprep.subr.mxu0 0.0
        %1652 = vmatpush1.msra.mxu0 0.0
        %1653 = vmatprep.subr.mxu0 0.0
        %1654 = vmatpush1.msra.mxu0 0.0
        %1655 = vmatprep.subr.mxu0 0.0
        %1656 = vmatpush1.msra.mxu0 0.0
        %1657 = vmatprep.subr.mxu0 0.0
        %1658 = vmatpush1.msra.mxu0 0.0
        %1659 = vmatprep.subr.mxu0 0.0
        %1660 = vmatpush1.msra.mxu0 0.0
        %1661 = vmatprep.subr.mxu0 0.0
        %1662 = vmatpush1.msra.mxu0 0.0
        %1663 = vmatprep.subr.mxu0 0.0
        %1664 = vmatpush1.msra.mxu0 0.0
        %1665 = vmatprep.subr.mxu0 0.0
        %1666 = vmatpush1.msra.mxu0 0.0
        %1667 = vmatprep.subr.mxu0 0.0
        %1668 = vmatpush1.msra.mxu0 0.0
        %1669 = vmatprep.subr.mxu0 0.0
        %1670 = vmatpush1.msra.mxu0 0.0
        %1671 = vmatprep.subr.mxu0 0.0
        %1672 = vmatpush1.msra.mxu0 0.0
        %1673 = vmatprep.subr.mxu0 0.0
        %1674 = vmatpush1.msra.mxu0 0.0
        %1675 = vmatprep.subr.mxu0 0.0
        %1676 = vmatpush1.msra.mxu0 0.0
        %1677 = vmatprep.subr.mxu0 0.0
        %1678 = vmatpush1.msra.mxu0 0.0
        %1679 = vmatprep.subr.mxu0 0.0
        %1680 = vmatpush1.msra.mxu0 0.0
        %1681 = vmatprep.subr.mxu0 0.0
        %1682 = vmatpush1.msra.mxu0 0.0
        %1683 = vmatprep.subr.mxu0 0.0
        %1684 = vmatpush1.msra.mxu0 0.0
        %1685 = vmatprep.mubr.f32.mxu0 0.0
        %1686 = vmatmul.mubr.f32.gmra.mrb[0].mxu0 %v317
        %v1687 = vpop.f32.mrb[0].mxu0
        %v1688 = vadd.f32 %v281, %v1687
        %v1689 = vpop.f32.mrb[0].mxu0
        %v1690 = vadd.f32 %v281, %v1689
        %1691 = vmatprep.mubr.f32.mxu0 0.0
        %1692 = vmatmul.mubr.f32.gmra.mrb[0].mxu0 %v320
        %v1693 = vpop.f32.mrb[0].mxu0
        %v1694 = vadd.f32 %v286, %v1693
        %v1695 = vpop.f32.mrb[0].mxu0
        %v1696 = vadd.f32 %v286, %v1695
        %1697 = vmatprep.mubr.f32.mxu0 0.0
        %1698 = vmatmul.mubr.f32.gmra.mrb[0].mxu0 %v323
        %v1699 = vpop.f32.mrb[0].mxu0
        %v1700 = vadd.f32 %v291, %v1699
        %v1701 = vpop.f32.mrb[0].mxu0
        %v1702 = vadd.f32 %v291, %v1701
        %1703 = vmatprep.mubr.f32.mxu0 0.0
        %1704 = vmatmul.mubr.f32.gmra.mrb[0].mxu0 %v326
        %v1705 = vpop.f32.mrb[0].mxu0
        %v1706 = vadd.f32 %v296, %v1705
        %v1707 = vpop.f32.mrb[0].mxu0
        %v1708 = vadd.f32 %v296, %v1707
        %1709 = vdwg.mxu0
        %v1710 = vstv %s1607
        %v1711 = vadd.f32 %v1688, %v1710
        %v1712 = vadd.f32 %v1690, %v1710
        %v1713 = vadd.f32 %v1694, %v1710
        %v1714 = vadd.f32 %v1696, %v1710
        %v1715 = vadd.f32 %v1700, %v1710
        %v1716 = vadd.f32 %v1702, %v1710
        %v1717 = vadd.f32 %v1706, %v1710
        %v1718 = vadd.f32 %v1708, %v1710
        %v1719 = vtanh.pop %v1711
        %v1720 = vtanh.pop %v1712
        %v1721 = vtanh.pop %v1713
        %v1722 = vtanh.pop %v1714
        %v1723 = vtanh.pop %v1715
        %v1724 = vtanh.pop %v1716
        %v1725 = vtanh.pop %v1717
        %v1726 = vtanh.pop %v1718
        %1727 = vmatprep.subr.mxu0 %v1720
        %1728 = vmatpush1.msra.mxu0 %v1719
        %1729 = vmatprep.subr.mxu0 %v1722
        %1730 = vmatpush1.msra.mxu0 %v1721
        %1731 = vmatprep.subr.mxu0 %v1724
        %1732 = vmatpush1.msra.mxu0 %v1723
        %1733 = vmatprep.subr.mxu0 %v1726
        %1734 = vmatpush1.msra.mxu0 %v1725
        %1735 = vmatprep.subr.mxu0 0.0
        %1736 = vmatpush1.msra.mxu0 0.0
        %1737 = vmatprep.subr.mxu0 0.0
        %1738 = vmatpush1.msra.mxu0 0.0
        %1739 = vmatprep.subr.mxu0 0.0
        %1740 = vmatpush1.msra.mxu0 0.0
        %1741 = vmatprep.subr.mxu0 0.0
        %1742 = vmatpush1.msra.mxu0 0.0
        %1743 = vmatprep.subr.mxu0 0.0
        %1744 = vmatpush1.msra.mxu0 0.0
        %1745 = vmatprep.subr.mxu0 0.0
        %1746 = vmatpush1.msra.mxu0 0.0
        %1747 = vmatprep.subr.mxu0 0.0
        %1748 = vmatpush1.msra.mxu0 0.0
        %1749 = vmatprep.subr.mxu0 0.0
        %1750 = vmatpush1.msra.mxu0 0.0
        %1751 = vmatprep.subr.mxu0 0.0
        %1752 = vmatpush1.msra.mxu0 0.0
        %1753 = vmatprep.subr.mxu0 0.0
        %1754 = vmatpush1.msra.mxu0 0.0
        %1755 = vmatprep.subr.mxu0 0.0
        %1756 = vmatpush1.msra.mxu0 0.0
        %1757 = vmatprep.subr.mxu0 0.0
        %1758 = vmatpush1.msra.mxu0 0.0
        %1759 = vmatprep.subr.mxu0 0.0
        %1760 = vmatpush1.msra.mxu0 0.0
        %1761 = vmatprep.subr.mxu0 0.0
        %1762 = vmatpush1.msra.mxu0 0.0
        %1763 = vmatprep.subr.mxu0 0.0
        %1764 = vmatpush1.msra.mxu0 0.0
        %1765 = vmatprep.subr.mxu0 0.0
        %1766 = vmatpush1.msra.mxu0 0.0
        %1767 = vmatprep.subr.mxu0 0.0
        %1768 = vmatpush1.msra.mxu0 0.0
        %1769 = vmatprep.subr.mxu0 0.0
        %1770 = vmatpush1.msra.mxu0 0.0
        %1771 = vmatprep.subr.mxu0 0.0
        %1772 = vmatpush1.msra.mxu0 0.0
        %1773 = vmatprep.subr.mxu0 0.0
        %1774 = vmatpush1.msra.mxu0 0.0
        %1775 = vmatprep.subr.mxu0 0.0
        %1776 = vmatpush1.msra.mxu0 0.0
        %1777 = vmatprep.subr.mxu0 0.0
        %1778 = vmatpush1.msra.mxu0 0.0
        %1779 = vmatprep.subr.mxu0 0.0
        %1780 = vmatpush1.msra.mxu0 0.0
        %1781 = vmatprep.subr.mxu0 0.0
        %1782 = vmatpush1.msra.mxu0 0.0
        %1783 = vmatprep.subr.mxu0 0.0
        %1784 = vmatpush1.msra.mxu0 0.0
        %1785 = vmatprep.subr.mxu0 0.0
        %1786 = vmatpush1.msra.mxu0 0.0
        %1787 = vmatprep.subr.mxu0 0.0
        %1788 = vmatpush1.msra.mxu0 0.0
        %1789 = vmatprep.subr.mxu0 0.0
        %1790 = vmatpush1.msra.mxu0 0.0
        %1791 = vmatprep.mubr.f32.mxu0 0.0
        %1792 = vmatmul.mubr.f32.gmra.mrb[0].mxu0 %v441
        %v1793 = vpop.f32.mrb[0].mxu0
        %v1794 = vadd.f32 %v302, %v1793
        %v1795 = vpop.f32.mrb[0].mxu0
        %v1796 = vadd.f32 %v302, %v1795
        %1797 = vdwg.mxu0
        %v1798 = vstv %s1608
        %v1799 = vmul.f32 %v1798, %v1794
        %v1800 = vmul.f32 %v1798, %v1796
        %v1803 = vcombine.low %v1799, %v1800
        %v1805 = vsub.f32 %v1606, %v1803
        %v1806 = vstv %s1609
        %v1807 = vmul.f32 %v1805, %v1806
        %v1808 = vstv %s1611
        %v1809 = vmul.f32 %v1808, %v1807
        %v1810 = vstv %s1612
        %v1811 = vmul.f32 %v1810, %v1593
        %v1812 = vadd.f32 %v1809, %v1811
        %v1813 = vstv %s1613
        %v1814 = vmul.f32 %v1813, %v1379
        %v1815 = vadd.f32 %v1812, %v1814
        %v1816 = vstv %s1614
        %v1817 = vmul.f32 %v1816, %v1606
        %v1818 = vstv %s1610
        %v1819 = vmul.f32 %v1818, %v1815
        %v1820 = vadd.f32 %v1817, %v1819
        %s1821 = sld [smem:[#allocation2 + $0x380]]
        %s1822 = sld [smem:[#allocation2 + $0x381]]
        %s1823 = sld [smem:[#allocation2 + $0x382]]
        %s1824 = sld [smem:[#allocation2 + $0x383]]
        %s1825 = sld [smem:[#allocation2 + $0x384]]
        %s1826 = sld [smem:[#allocation2 + $0x385]]
        %s1827 = sld [smem:[#allocation2 + $0x386]]
        %s1828 = sld [smem:[#allocation2 + $0x387]]
        %v1830 = vcombine.high %v1820, %v1820
        %v1831 = vsel %vm328, %v1820, 0
        %v1833 = vsel %vm328, %v1830, 0
        %1835 = vmatprep.subr.mxu0 %v1833
        %1836 = vmatpush1.msra.mxu0 %v1831
        %1837 = vmatprep.subr.mxu0 0.0
        %1838 = vmatpush1.msra.mxu0 0.0
        %1839 = vmatprep.subr.mxu0 0.0
        %1840 = vmatpush1.msra.mxu0 0.0
        %1841 = vmatprep.subr.mxu0 0.0
        %1842 = vmatpush1.msra.mxu0 0.0
        %1843 = vmatprep.subr.mxu0 0.0
        %1844 = vmatpush1.msra.mxu0 0.0
        %1845 = vmatprep.subr.mxu0 0.0
        %1846 = vmatpush1.msra.mxu0 0.0
        %1847 = vmatprep.subr.mxu0 0.0
        %1848 = vmatpush1.msra.mxu0 0.0
        %1849 = vmatprep.subr.mxu0 0.0
        %1850 = vmatpush1.msra.mxu0 0.0
        %1851 = vmatprep.subr.mxu0 0.0
        %1852 = vmatpush1.msra.mxu0 0.0
        %1853 = vmatprep.subr.mxu0 0.0
        %1854 = vmatpush1.msra.mxu0 0.0
        %1855 = vmatprep.subr.mxu0 0.0
        %1856 = vmatpush1.msra.mxu0 0.0
        %1857 = vmatprep.subr.mxu0 0.0
        %1858 = vmatpush1.msra.mxu0 0.0
        %1859 = vmatprep.subr.mxu0 0.0
        %1860 = vmatpush1.msra.mxu0 0.0
        %1861 = vmatprep.subr.mxu0 0.0
        %1862 = vmatpush1.msra.mxu0 0.0
        %1863 = vmatprep.subr.mxu0 0.0
        %1864 = vmatpush1.msra.mxu0 0.0
        %1865 = vmatprep.subr.mxu0 0.0
        %1866 = vmatpush1.msra.mxu0 0.0
        %1867 = vmatprep.subr.mxu0 0.0
        %1868 = vmatpush1.msra.mxu0 0.0
        %1869 = vmatprep.subr.mxu0 0.0
        %1870 = vmatpush1.msra.mxu0 0.0
        %1871 = vmatprep.subr.mxu0 0.0
        %1872 = vmatpush1.msra.mxu0 0.0
        %1873 = vmatprep.subr.mxu0 0.0
        %1874 = vmatpush1.msra.mxu0 0.0
        %1875 = vmatprep.subr.mxu0 0.0
        %1876 = vmatpush1.msra.mxu0 0.0
        %1877 = vmatprep.subr.mxu0 0.0
        %1878 = vmatpush1.msra.mxu0 0.0
        %1879 = vmatprep.subr.mxu0 0.0
        %1880 = vmatpush1.msra.mxu0 0.0
        %1881 = vmatprep.subr.mxu0 0.0
        %1882 = vmatpush1.msra.mxu0 0.0
        %1883 = vmatprep.subr.mxu0 0.0
        %1884 = vmatpush1.msra.mxu0 0.0
        %1885 = vmatprep.subr.mxu0 0.0
        %1886 = vmatpush1.msra.mxu0 0.0
        %1887 = vmatprep.subr.mxu0 0.0
        %1888 = vmatpush1.msra.mxu0 0.0
        %1889 = vmatprep.subr.mxu0 0.0
        %1890 = vmatpush1.msra.mxu0 0.0
        %1891 = vmatprep.subr.mxu0 0.0
        %1892 = vmatpush1.msra.mxu0 0.0
        %1893 = vmatprep.subr.mxu0 0.0
        %1894 = vmatpush1.msra.mxu0 0.0
        %1895 = vmatprep.subr.mxu0 0.0
        %1896 = vmatpush1.msra.mxu0 0.0
        %1897 = vmatprep.subr.mxu0 0.0
        %1898 = vmatpush1.msra.mxu0 0.0
        %1899 = vmatprep.mubr.f32.mxu0 0.0
        %1900 = vmatmul.mubr.f32.gmra.mrb[0].mxu0 %v317
        %v1901 = vpop.f32.mrb[0].mxu0
        %v1902 = vadd.f32 %v281, %v1901
        %v1903 = vpop.f32.mrb[0].mxu0
        %v1904 = vadd.f32 %v281, %v1903
        %1905 = vmatprep.mubr.f32.mxu0 0.0
        %1906 = vmatmul.mubr.f32.gmra.mrb[0].mxu0 %v320
        %v1907 = vpop.f32.mrb[0].mxu0
        %v1908 = vadd.f32 %v286, %v1907
        %v1909 = vpop.f32.mrb[0].mxu0
        %v1910 = vadd.f32 %v286, %v1909
        %1911 = vmatprep.mubr.f32.mxu0 0.0
        %1912 = vmatmul.mubr.f32.gmra.mrb[0].mxu0 %v323
        %v1913 = vpop.f32.mrb[0].mxu0
        %v1914 = vadd.f32 %v291, %v1913
        %v1915 = vpop.f32.mrb[0].mxu0
        %v1916 = vadd.f32 %v291, %v1915
        %1917 = vmatprep.mubr.f32.mxu0 0.0
        %1918 = vmatmul.mubr.f32.gmra.mrb[0].mxu0 %v326
        %v1919 = vpop.f32.mrb[0].mxu0
        %v1920 = vadd.f32 %v296, %v1919
        %v1921 = vpop.f32.mrb[0].mxu0
        %v1922 = vadd.f32 %v296, %v1921
        %1923 = vdwg.mxu0
        %v1924 = vstv %s1821
        %v1925 = vadd.f32 %v1902, %v1924
        %v1926 = vadd.f32 %v1904, %v1924
        %v1927 = vadd.f32 %v1908, %v1924
        %v1928 = vadd.f32 %v1910, %v1924
        %v1929 = vadd.f32 %v1914, %v1924
        %v1930 = vadd.f32 %v1916, %v1924
        %v1931 = vadd.f32 %v1920, %v1924
        %v1932 = vadd.f32 %v1922, %v1924
        %v1933 = vtanh.pop %v1925
        %v1934 = vtanh.pop %v1926
        %v1935 = vtanh.pop %v1927
        %v1936 = vtanh.pop %v1928
        %v1937 = vtanh.pop %v1929
        %v1938 = vtanh.pop %v1930
        %v1939 = vtanh.pop %v1931
        %v1940 = vtanh.pop %v1932
        %1941 = vmatprep.subr.mxu0 %v1934
        %1942 = vmatpush1.msra.mxu0 %v1933
        %1943 = vmatprep.subr.mxu0 %v1936
        %1944 = vmatpush1.msra.mxu0 %v1935
        %1945 = vmatprep.subr.mxu0 %v1938
        %1946 = vmatpush1.msra.mxu0 %v1937
        %1947 = vmatprep.subr.mxu0 %v1940
        %1948 = vmatpush1.msra.mxu0 %v1939
        %1949 = vmatprep.subr.mxu0 0.0
        %1950 = vmatpush1.msra.mxu0 0.0
        %1951 = vmatprep.subr.mxu0 0.0
        %1952 = vmatpush1.msra.mxu0 0.0
        %1953 = vmatprep.subr.mxu0 0.0
        %1954 = vmatpush1.msra.mxu0 0.0
        %1955 = vmatprep.subr.mxu0 0.0
        %1956 = vmatpush1.msra.mxu0 0.0
        %1957 = vmatprep.subr.mxu0 0.0
        %1958 = vmatpush1.msra.mxu0 0.0
        %1959 = vmatprep.subr.mxu0 0.0
        %1960 = vmatpush1.msra.mxu0 0.0
        %1961 = vmatprep.subr.mxu0 0.0
        %1962 = vmatpush1.msra.mxu0 0.0
        %1963 = vmatprep.subr.mxu0 0.0
        %1964 = vmatpush1.msra.mxu0 0.0
        %1965 = vmatprep.subr.mxu0 0.0
        %1966 = vmatpush1.msra.mxu0 0.0
        %1967 = vmatprep.subr.mxu0 0.0
        %1968 = vmatpush1.msra.mxu0 0.0
        %1969 = vmatprep.subr.mxu0 0.0
        %1970 = vmatpush1.msra.mxu0 0.0
        %1971 = vmatprep.subr.mxu0 0.0
        %1972 = vmatpush1.msra.mxu0 0.0
        %1973 = vmatprep.subr.mxu0 0.0
        %1974 = vmatpush1.msra.mxu0 0.0
        %1975 = vmatprep.subr.mxu0 0.0
        %1976 = vmatpush1.msra.mxu0 0.0
        %1977 = vmatprep.subr.mxu0 0.0
        %1978 = vmatpush1.msra.mxu0 0.0
        %1979 = vmatprep.subr.mxu0 0.0
        %1980 = vmatpush1.msra.mxu0 0.0
        %1981 = vmatprep.subr.mxu0 0.0
        %1982 = vmatpush1.msra.mxu0 0.0
        %1983 = vmatprep.subr.mxu0 0.0
        %1984 = vmatpush1.msra.mxu0 0.0
        %1985 = vmatprep.subr.mxu0 0.0
        %1986 = vmatpush1.msra.mxu0 0.0
        %1987 = vmatprep.subr.mxu0 0.0
        %1988 = vmatpush1.msra.mxu0 0.0
        %1989 = vmatprep.subr.mxu0 0.0
        %1990 = vmatpush1.msra.mxu0 0.0
        %1991 = vmatprep.subr.mxu0 0.0
        %1992 = vmatpush1.msra.mxu0 0.0
        %1993 = vmatprep.subr.mxu0 0.0
        %1994 = vmatpush1.msra.mxu0 0.0
        %1995 = vmatprep.subr.mxu0 0.0
        %1996 = vmatpush1.msra.mxu0 0.0
        %1997 = vmatprep.subr.mxu0 0.0
        %1998 = vmatpush1.msra.mxu0 0.0
        %1999 = vmatprep.subr.mxu0 0.0
        %2000 = vmatpush1.msra.mxu0 0.0
        %2001 = vmatprep.subr.mxu0 0.0
        %2002 = vmatpush1.msra.mxu0 0.0
        %2003 = vmatprep.subr.mxu0 0.0
        %2004 = vmatpush1.msra.mxu0 0.0
        %2005 = vmatprep.mubr.f32.mxu0 0.0
        %2006 = vmatmul.mubr.f32.gmra.mrb[0].mxu0 %v441
        %v2007 = vpop.f32.mrb[0].mxu0
        %v2008 = vadd.f32 %v302, %v2007
        %v2009 = vpop.f32.mrb[0].mxu0
        %v2010 = vadd.f32 %v302, %v2009
        %2011 = vdwg.mxu0
        %v2012 = vstv %s1822
        %v2013 = vmul.f32 %v2012, %v2008
        %v2014 = vmul.f32 %v2012, %v2010
        %v2017 = vcombine.low %v2013, %v2014
        %v2019 = vsub.f32 %v1820, %v2017
        %v2020 = vstv %s1823
        %v2021 = vmul.f32 %v2019, %v2020
        %v2022 = vstv %s1825
        %v2023 = vmul.f32 %v2022, %v2021
        %v2024 = vstv %s1826
        %v2025 = vmul.f32 %v2024, %v1807
        %v2026 = vadd.f32 %v2023, %v2025
        %v2027 = vstv %s1827
        %v2028 = vmul.f32 %v2027, %v1593
        %v2029 = vadd.f32 %v2026, %v2028
        %v2030 = vstv %s1828
        %v2031 = vmul.f32 %v2030, %v1820
        %v2032 = vstv %s1824
        %v2033 = vmul.f32 %v2032, %v2029
        %v2034 = vadd.f32 %v2031, %v2033
        %2035 = vst [vmem:[%s267] sm:$0xff] %v2034
        %s2036 = smul.u32 2, %s18
        %p2037 = scmp.lt.s32.totalorder %s2036, 3
        %s2038 = scalar_select %p2037, %s2036, 3
        %s2039 = smul.addr %s2038, 4
        %s2040 = scalar_lea.vmem %s6, %s2039
        // Predicated region
        $region49: #{_ab_forward.1} parent=43 // pred_check
          %p2041 = pneg %p167
        $region50: #{_ab_forward.1} parent=43 // pred_check_branch
          %2043 = sbr.rel (%p2041) target = $region52
        $region51: #{_ab_forward.1} parent=43 // pred_region
          %s2044 = smul.u32 2, %s18
        $region52: #{_ab_forward.1} parent=43 // pred_fallthru
          _
      $region44: #{_ab_forward.1} parent=5 // pred_fallthru
        _
      %p2045 = scmp.le.s32.totalorder 2, %s13
      // Predicated region
      $region53: #{_ab_forward.1} parent=5 // pred_check
        %p2046 = pneg %p2045
      $region54: #{_ab_forward.1} parent=5 // pred_check_branch
        %2048 = sbr.rel (%p2046) target = $region56
      $region55: #{_ab_forward.1} parent=5 // pred_region
        %s2049 = ssub.s32 %s13, 2
        // Predicated region
        $region57: #{_ab_forward.1} parent=55 // pred_check
          %p2050 = pneg %p173
        $region58: #{_ab_forward.1} parent=55 // pred_check_branch
          %2052 = sbr.rel (%p2050) target = $region60
        $region59: #{_ab_forward.1} parent=55 // pred_region
          %s2053 = smul.u32 2, %s19
          %p2054 = scmp.lt.s32.totalorder %s2053, 3
          %s2055 = scalar_select %p2054, %s2053, 3
          %s2056 = smul.addr %s2055, 4
          %s2057 = scalar_lea.vmem %s6, %s2056
        $region60: #{_ab_forward.1} parent=55 // pred_fallthru
          _
      $region56: #{_ab_forward.1} parent=5 // pred_fallthru
        _
    $region6: #{_ab_forward.1} parent=1 // loop_footer
      %s17 = sadd.s32 1, %s13
    $region7: #{_ab_forward.1} parent=1 // loop_footer_branch
      %12 = sbr.rel target = $region3
    $region8: #{_ab_forward.1} parent=1 // loop_exit
      _
    %2058 = vsyncpa [#allocation3], 1
    %s2059 = scalar_lea.sflag [#allocation3], 1
    %2060 = vsyncpa %s2059, 1

</llo_original>
